<compile_context>
chip_gen: v7x
topology: tpu7x:2x2x1
jax: 0.10.0
libtpu: 0.0.40
codegen_flags: <defaults>
</compile_context>

<pallas_src>
import functools

import jax
import jax.numpy as jnp
from jax.experimental import pallas as pl
from jax.experimental.pallas import tpu as pltpu

# ----------------------------- problem sizes --------------------------------
N = 16            # nodes per graph
INPUT_DIM = 32
OUTPUT_DIM = 32
NUM_HEADS = 4
HEAD_DIM = OUTPUT_DIM // NUM_HEADS
SCALING = HEAD_DIM ** (-0.5)

Q_OFF = 0
K_OFF = OUTPUT_DIM
V_OFF = 2 * OUTPUT_DIM

_NEG_BIG = -1e30  # finite "-inf" sentinel: avoids inf-inf NaNs in the softmax


# ------------------------------- kernel -------------------------------------
def sparse_attention_kernel(
    x_ref,      # (BB, N, INPUT_DIM)        f32
    adj_ref,    # (BB, N, N)                f32
    wqkv_ref,   # (INPUT_DIM, 3*OUTPUT_DIM) bf16  (scaling folded into Q cols)
    bqkv_ref,   # (1, 3*OUTPUT_DIM)         f32
    wo_ref,     # (OUTPUT_DIM, OUTPUT_DIM)  bf16  (rows reordered to kernel head layout)
    bo_ref,     # (1, OUTPUT_DIM)           f32
    y_ref,      # (BB, N, OUTPUT_DIM)       f32
    *,
    bb: int,
):
    # ---- gather the BB per-graph slabs into one (BB*N, INPUT_DIM) operand ---
    x = jnp.concatenate([x_ref[b] for b in range(bb)], axis=0).astype(jnp.bfloat16)

    # ---- fused Q/K/V projection: ONE bf16 MXU matmul, f32 accumulate --------
    qkv = jnp.dot(x, wqkv_ref[...], preferred_element_type=jnp.float32)
    qkv = (qkv + bqkv_ref[...]).astype(jnp.bfloat16)        # (BB*N, 3*OUTPUT_DIM)

    # ---- SDDMM scores per (graph, head), no explicit k.T, stacked on sublanes
    adj_blocks = [adj_ref[b] for b in range(bb)]            # each (N, N) f32
    scores = []
    for b in range(bb):
        rows = slice(b * N, (b + 1) * N)
        for h in range(NUM_HEADS):
            q_h = qkv[rows, Q_OFF + h * HEAD_DIM: Q_OFF + (h + 1) * HEAD_DIM]
            k_h = qkv[rows, K_OFF + h * HEAD_DIM: K_OFF + (h + 1) * HEAD_DIM]
            scores.append(
                jax.lax.dot_general(
                    q_h, k_h, (((1,), (1,)), ((), ())),
                    preferred_element_type=jnp.float32))    # (N, N)
    s = jnp.concatenate(scores, axis=0)                     # (BB*H*N, N) f32

    # dglsp.bsddmm semantics: (q @ k^T) evaluated on the adjacency pattern,
    # multiplied by the stored edge values.
    adj_t = jnp.concatenate(
        [a for a in adj_blocks for _ in range(NUM_HEADS)], axis=0)   # (BB*H*N, N)
    mask_t = adj_t != 0.0
    s = jnp.where(mask_t, s * adj_t, _NEG_BIG)

    # ---- single batched sparse row-softmax over all graphs and heads --------
    m = jnp.max(s, axis=-1, keepdims=True)
    p = jnp.where(mask_t, jnp.exp(s - m), 0.0)
    denom = jnp.sum(p, axis=-1, keepdims=True)
    denom = jnp.where(denom == 0.0, 1.0, denom)             # empty row -> zeros
    attn = (p * pl.reciprocal(denom, approx=True)).astype(jnp.bfloat16)

    # ---- SpMM per (graph, head), reassembled, ONE fused output projection ---
    outs = []
    for b in range(bb):
        rows = slice(b * N, (b + 1) * N)
        head_outs = []
        for h in range(NUM_HEADS):
            idx = b * NUM_HEADS + h
            a_bh = attn[idx * N:(idx + 1) * N, :]           # (N, N)
            v_h = qkv[rows, V_OFF + h * HEAD_DIM: V_OFF + (h + 1) * HEAD_DIM]
            head_outs.append(
                jnp.dot(a_bh, v_h, preferred_element_type=jnp.float32))
        outs.append(jnp.concatenate(head_outs, axis=1))     # (N, OUTPUT_DIM)
    out_all = jnp.concatenate(outs, axis=0).astype(jnp.bfloat16)     # (BB*N, OUTPUT_DIM)

    y = jnp.dot(out_all, wo_ref[...], preferred_element_type=jnp.float32)
    y = (y + bo_ref[...]).astype(y_ref.dtype)                # (BB*N, OUTPUT_DIM)

    for b in range(bb):
        y_ref[b] = y[b * N:(b + 1) * N, :]


# ------------------------------- wrapper -------------------------------------
@functools.partial(jax.jit, static_argnames=("graphs_per_block",))
def sparse_attention(x, adj, params, graphs_per_block=2):
    """x: (B, N, INPUT_DIM), adj: (B, N, N) -> (B, N, OUTPUT_DIM)."""
    w_qkv, b_qkv, w_o, b_o = params
    B = x.shape[0]
    bb = graphs_per_block if (graphs_per_block > 0 and B % graphs_per_block == 0) else 1
    kernel = functools.partial(sparse_attention_kernel, bb=bb)

    grid_spec = pltpu.PrefetchScalarGridSpec(
        num_scalar_prefetch=0,
        grid=(B // bb,),
        in_specs=[
            pl.BlockSpec((bb, N, INPUT_DIM), lambda g: (g, 0, 0)),
            pl.BlockSpec((bb, N, N), lambda g: (g, 0, 0)),
            pl.BlockSpec((INPUT_DIM, 3 * OUTPUT_DIM), lambda g: (0, 0)),
            pl.BlockSpec((1, 3 * OUTPUT_DIM), lambda g: (0, 0)),
            pl.BlockSpec((OUTPUT_DIM, OUTPUT_DIM), lambda g: (0, 0)),
            pl.BlockSpec((1, OUTPUT_DIM), lambda g: (0, 0)),
        ],
        out_specs=pl.BlockSpec((bb, N, OUTPUT_DIM), lambda g: (g, 0, 0)),
    )
    return pl.pallas_call(
        kernel,
        out_shape=jax.ShapeDtypeStruct((B, N, OUTPUT_DIM), jnp.float32),
        grid_spec=grid_spec,
        compiler_params=pltpu.CompilerParams(
            dimension_semantics=("parallel",)),
    )(x, adj, w_qkv, b_qkv, w_o, b_o)


# ----------------------- parameter init / reshaping (glue) -------------------
def init_linear(key, out_features, in_features):
    """Deterministic torch.nn.Linear-style init: U(-1/sqrt(fan_in), 1/sqrt(fan_in))."""
    kw, kb = jax.random.split(key)
    bound = 1.0 / jnp.sqrt(in_features)
    w = jax.random.uniform(kw, (out_features, in_features), jnp.float32, -bound, bound)
    b = jax.random.uniform(kb, (out_features,), jnp.float32, -bound, bound)
    return w, b


def _per_head_cols(w, b):
    """torch Linear (Dout, Din) -> (Din, Dout) matmul weight whose column
    c = h*HEAD_DIM + d corresponds to torch output index j = d*NUM_HEADS + h,
    i.e. proj(x).reshape(N, head_dim, num_heads)[:, d, h]."""
    din = w.shape[1]
    w_k = jnp.transpose(
        w.T.reshape(din, HEAD_DIM, NUM_HEADS), (0, 2, 1)).reshape(din, OUTPUT_DIM)
    b_k = b.reshape(HEAD_DIM, NUM_HEADS).T.reshape(OUTPUT_DIM)
    return w_k, b_k


def prepare_params(raw_q, raw_k, raw_v, raw_o):
    wq, bq = _per_head_cols(*raw_q)
    wk, bk = _per_head_cols(*raw_k)
    wv, bv = _per_head_cols(*raw_v)
    # fold the head_dim**-0.5 attention scaling into the Q projection (one-time)
    wq = wq * SCALING
    bq = bq * SCALING
    w_qkv = jnp.concatenate([wq, wk, wv], axis=1).astype(jnp.bfloat16)   # (32, 96)
    b_qkv = jnp.concatenate([bq, bk, bv]).reshape(1, 3 * OUTPUT_DIM)     # f32

    wo, bo = raw_o
    # out_proj consumes out.reshape(N, -1) with column j = d*NUM_HEADS + h;
    # reorder its rows to the kernel's c = h*HEAD_DIM + d ordering.
    w_o = jnp.transpose(
        wo.T.reshape(HEAD_DIM, NUM_HEADS, OUTPUT_DIM), (1, 0, 2)
    ).reshape(OUTPUT_DIM, OUTPUT_DIM).astype(jnp.bfloat16)
    b_o = bo.reshape(1, OUTPUT_DIM)
    return w_qkv, b_qkv, w_o, b_o


# ------------------------------ JAX reference --------------------------------
def reference_single(x, adj, raw_params):
    """Pure-JAX (f32) mirror of the PyTorch forward for one graph."""
    (wq, bq), (wk, bk), (wv, bv), (wo, bo) = raw_params
    q = (x @ wq.T + bq).reshape(N, HEAD_DIM, NUM_HEADS) * SCALING
    k = (x @ wk.T + bk).reshape(N, HEAD_DIM, NUM_HEADS)
    v = (x @ wv.T + bv).reshape(N, HEAD_DIM, NUM_HEADS)
    mask = adj != 0.0
    outs = []
    for h in range(NUM_HEADS):
        s = (q[:, :, h] @ k[:, :, h].T) * adj
        s = jnp.where(mask, s, -jnp.inf)
        m = jnp.max(s, axis=-1, keepdims=True)
        m = jnp.where(jnp.isfinite(m), m, 0.0)
        p = jnp.where(mask, jnp.exp(s - m), 0.0)
        denom = jnp.sum(p, axis=-1, keepdims=True)
        denom = jnp.where(denom == 0.0, 1.0, denom)
        outs.append((p / denom) @ v[:, :, h])                 # (N, Dh)
    out = jnp.stack(outs, axis=-1).reshape(N, OUTPUT_DIM)     # j = d*H + h
    return out @ wo.T + bo


# --------------------------------- main ---------------------------------------
if __name__ == "__main__":
    key = jax.random.PRNGKey(0)
    kx, kadj, kq, kk, kv, ko = jax.random.split(key, 6)

    B = 4  # graphs per call (grid over blocks of 2 graphs)
    x = jax.random.normal(kx, (B, N, INPUT_DIM), jnp.float32)

    # deterministic sparse adjacency: ~30% density + self loops, edge values = 1.0
    adj = (jax.random.uniform(kadj, (B, N, N)) < 0.3).astype(jnp.float32)
    adj = jnp.maximum(adj, jnp.eye(N, dtype=jnp.float32)[None])

    raw_q = init_linear(kq, OUTPUT_DIM, INPUT_DIM)
    raw_k = init_linear(kk, OUTPUT_DIM, INPUT_DIM)
    raw_v = init_linear(kv, OUTPUT_DIM, INPUT_DIM)
    raw_o = init_linear(ko, OUTPUT_DIM, OUTPUT_DIM)
    params = prepare_params(raw_q, raw_k, raw_v, raw_o)

    y = jax.block_until_ready(sparse_attention(x, adj, params))

    y_ref = jnp.stack(
        [reference_single(x[b], adj[b], (raw_q, raw_k, raw_v, raw_o)) for b in range(B)]
    )
    max_err = float(jnp.max(jnp.abs(y - y_ref)))
    # bf16 MXU operands -> loosened tolerance vs. the f32 reference
    if not jnp.allclose(y, y_ref, atol=5e-2, rtol=5e-2):
        raise AssertionError(f"Pallas kernel mismatch vs reference, max abs err = {max_err}")
    print("KERNEL_OK")
</pallas_src>

<mosaic_0001>
module attributes {stable_mosaic.version = 11 : i64} {
  func.func @sparse_attention_kernel(%arg0: i32, %arg1: memref<2x16x32xf32, #tpu.memory_space<vmem>>, %arg2: memref<2x16x16xf32, #tpu.memory_space<vmem>>, %arg3: memref<32x96xbf16, #tpu.memory_space<vmem>>, %arg4: memref<1x96xf32, #tpu.memory_space<vmem>>, %arg5: memref<32x32xbf16, #tpu.memory_space<vmem>>, %arg6: memref<1x32xf32, #tpu.memory_space<vmem>>, %arg7: memref<2x16x32xf32, #tpu.memory_space<vmem>>) attributes {dimension_semantics = [#tpu.dimension_semantics<parallel>], iteration_bounds = array<i64: 2>, scalar_prefetch = 0 : i64, scratch_operands = 0 : i64, tpu.core_type = #tpu.core_type<tc>, window_params = [{transform_indices = @transform_0, window_bounds = array<i64: 2, 16, 32>}, {transform_indices = @transform_1, window_bounds = array<i64: 2, 16, 16>}, {pipeline_mode = #tpu.pipeline_mode<synchronous>, transform_indices = @transform_2, window_bounds = array<i64: 32, 96>}, {pipeline_mode = #tpu.pipeline_mode<synchronous>, transform_indices = @transform_3, window_bounds = array<i64: 1, 96>}, {pipeline_mode = #tpu.pipeline_mode<synchronous>, transform_indices = @transform_4, window_bounds = array<i64: 32, 32>}, {pipeline_mode = #tpu.pipeline_mode<synchronous>, transform_indices = @transform_5, window_bounds = array<i64: 1, 32>}, {transform_indices = @transform_6, window_bounds = array<i64: 2, 16, 32>}]} {
    %c0 = arith.constant 0 : index
    %c0_0 = arith.constant 0 : index
    %c0_1 = arith.constant 0 : index
    %0 = vector.load %arg1[%c0, %c0_0, %c0_1] : memref<2x16x32xf32, #tpu.memory_space<vmem>>, vector<1x16x32xf32>
    %1 = vector.shape_cast %0 : vector<1x16x32xf32> to vector<16x32xf32>
    %c1 = arith.constant 1 : index
    %c0_2 = arith.constant 0 : index
    %c0_3 = arith.constant 0 : index
    %2 = vector.load %arg1[%c1, %c0_2, %c0_3] : memref<2x16x32xf32, #tpu.memory_space<vmem>>, vector<1x16x32xf32>
    %3 = vector.shape_cast %2 : vector<1x16x32xf32> to vector<16x32xf32>
    %4 = tpu.concatenate %1, %3 in 0 : vector<16x32xf32>, vector<16x32xf32> -> vector<32x32xf32>
    %5 = arith.truncf %4 : vector<32x32xf32> to vector<32x32xbf16>
    %c0_4 = arith.constant 0 : index
    %c0_5 = arith.constant 0 : index
    %6 = vector.load %arg3[%c0_4, %c0_5] : memref<32x96xbf16, #tpu.memory_space<vmem>>, vector<32x96xbf16>
    %cst = arith.constant dense<0.000000e+00> : vector<32x96xf32>
    %7 = tpu.matmul %5, %6, %cst {dimension_numbers = #tpu.dot_dimension_numbers<[1], [0], [0], [1], [0, 0, 1, 1], [], []>} : vector<32x32xbf16>, vector<32x96xbf16>, vector<32x96xf32> -> vector<32x96xf32>
    %c0_6 = arith.constant 0 : index
    %c0_7 = arith.constant 0 : index
    %8 = vector.load %arg4[%c0_6, %c0_7] : memref<1x96xf32, #tpu.memory_space<vmem>>, vector<1x96xf32>
    %9 = vector.broadcast %8 : vector<1x96xf32> to vector<32x96xf32>
    %10 = arith.addf %7, %9 : vector<32x96xf32>
    %11 = arith.truncf %10 : vector<32x96xf32> to vector<32x96xbf16>
    %c0_8 = arith.constant 0 : index
    %c0_9 = arith.constant 0 : index
    %c0_10 = arith.constant 0 : index
    %12 = vector.load %arg2[%c0_8, %c0_9, %c0_10] : memref<2x16x16xf32, #tpu.memory_space<vmem>>, vector<1x16x16xf32>
    %13 = vector.shape_cast %12 : vector<1x16x16xf32> to vector<16x16xf32>
    %c1_11 = arith.constant 1 : index
    %c0_12 = arith.constant 0 : index
    %c0_13 = arith.constant 0 : index
    %14 = vector.load %arg2[%c1_11, %c0_12, %c0_13] : memref<2x16x16xf32, #tpu.memory_space<vmem>>, vector<1x16x16xf32>
    %15 = vector.shape_cast %14 : vector<1x16x16xf32> to vector<16x16xf32>
    %16 = vector.extract_strided_slice %11 {offsets = [0, 0], sizes = [16, 8], strides = [1, 1]} : vector<32x96xbf16> to vector<16x8xbf16>
    %17 = vector.extract_strided_slice %11 {offsets = [0, 32], sizes = [16, 8], strides = [1, 1]} : vector<32x96xbf16> to vector<16x8xbf16>
    %cst_14 = arith.constant dense<0.000000e+00> : vector<16x16xf32>
    %18 = tpu.matmul %16, %17, %cst_14 {dimension_numbers = #tpu.dot_dimension_numbers<[1], [1], [0], [0], [0, 0, 1, 0], [], []>} : vector<16x8xbf16>, vector<16x8xbf16>, vector<16x16xf32> -> vector<16x16xf32>
    %19 = vector.extract_strided_slice %11 {offsets = [0, 8], sizes = [16, 8], strides = [1, 1]} : vector<32x96xbf16> to vector<16x8xbf16>
    %20 = vector.extract_strided_slice %11 {offsets = [0, 40], sizes = [16, 8], strides = [1, 1]} : vector<32x96xbf16> to vector<16x8xbf16>
    %cst_15 = arith.constant dense<0.000000e+00> : vector<16x16xf32>
    %21 = tpu.matmul %19, %20, %cst_15 {dimension_numbers = #tpu.dot_dimension_numbers<[1], [1], [0], [0], [0, 0, 1, 0], [], []>} : vector<16x8xbf16>, vector<16x8xbf16>, vector<16x16xf32> -> vector<16x16xf32>
    %22 = vector.extract_strided_slice %11 {offsets = [0, 16], sizes = [16, 8], strides = [1, 1]} : vector<32x96xbf16> to vector<16x8xbf16>
    %23 = vector.extract_strided_slice %11 {offsets = [0, 48], sizes = [16, 8], strides = [1, 1]} : vector<32x96xbf16> to vector<16x8xbf16>
    %cst_16 = arith.constant dense<0.000000e+00> : vector<16x16xf32>
    %24 = tpu.matmul %22, %23, %cst_16 {dimension_numbers = #tpu.dot_dimension_numbers<[1], [1], [0], [0], [0, 0, 1, 0], [], []>} : vector<16x8xbf16>, vector<16x8xbf16>, vector<16x16xf32> -> vector<16x16xf32>
    %25 = vector.extract_strided_slice %11 {offsets = [0, 24], sizes = [16, 8], strides = [1, 1]} : vector<32x96xbf16> to vector<16x8xbf16>
    %26 = vector.extract_strided_slice %11 {offsets = [0, 56], sizes = [16, 8], strides = [1, 1]} : vector<32x96xbf16> to vector<16x8xbf16>
    %cst_17 = arith.constant dense<0.000000e+00> : vector<16x16xf32>
    %27 = tpu.matmul %25, %26, %cst_17 {dimension_numbers = #tpu.dot_dimension_numbers<[1], [1], [0], [0], [0, 0, 1, 0], [], []>} : vector<16x8xbf16>, vector<16x8xbf16>, vector<16x16xf32> -> vector<16x16xf32>
    %28 = vector.extract_strided_slice %11 {offsets = [16, 0], sizes = [16, 8], strides = [1, 1]} : vector<32x96xbf16> to vector<16x8xbf16>
    %29 = vector.extract_strided_slice %11 {offsets = [16, 32], sizes = [16, 8], strides = [1, 1]} : vector<32x96xbf16> to vector<16x8xbf16>
    %cst_18 = arith.constant dense<0.000000e+00> : vector<16x16xf32>
    %30 = tpu.matmul %28, %29, %cst_18 {dimension_numbers = #tpu.dot_dimension_numbers<[1], [1], [0], [0], [0, 0, 1, 0], [], []>} : vector<16x8xbf16>, vector<16x8xbf16>, vector<16x16xf32> -> vector<16x16xf32>
    %31 = vector.extract_strided_slice %11 {offsets = [16, 8], sizes = [16, 8], strides = [1, 1]} : vector<32x96xbf16> to vector<16x8xbf16>
    %32 = vector.extract_strided_slice %11 {offsets = [16, 40], sizes = [16, 8], strides = [1, 1]} : vector<32x96xbf16> to vector<16x8xbf16>
    %cst_19 = arith.constant dense<0.000000e+00> : vector<16x16xf32>
    %33 = tpu.matmul %31, %32, %cst_19 {dimension_numbers = #tpu.dot_dimension_numbers<[1], [1], [0], [0], [0, 0, 1, 0], [], []>} : vector<16x8xbf16>, vector<16x8xbf16>, vector<16x16xf32> -> vector<16x16xf32>
    %34 = vector.extract_strided_slice %11 {offsets = [16, 16], sizes = [16, 8], strides = [1, 1]} : vector<32x96xbf16> to vector<16x8xbf16>
    %35 = vector.extract_strided_slice %11 {offsets = [16, 48], sizes = [16, 8], strides = [1, 1]} : vector<32x96xbf16> to vector<16x8xbf16>
    %cst_20 = arith.constant dense<0.000000e+00> : vector<16x16xf32>
    %36 = tpu.matmul %34, %35, %cst_20 {dimension_numbers = #tpu.dot_dimension_numbers<[1], [1], [0], [0], [0, 0, 1, 0], [], []>} : vector<16x8xbf16>, vector<16x8xbf16>, vector<16x16xf32> -> vector<16x16xf32>
    %37 = vector.extract_strided_slice %11 {offsets = [16, 24], sizes = [16, 8], strides = [1, 1]} : vector<32x96xbf16> to vector<16x8xbf16>
    %38 = vector.extract_strided_slice %11 {offsets = [16, 56], sizes = [16, 8], strides = [1, 1]} : vector<32x96xbf16> to vector<16x8xbf16>
    %cst_21 = arith.constant dense<0.000000e+00> : vector<16x16xf32>
    %39 = tpu.matmul %37, %38, %cst_21 {dimension_numbers = #tpu.dot_dimension_numbers<[1], [1], [0], [0], [0, 0, 1, 0], [], []>} : vector<16x8xbf16>, vector<16x8xbf16>, vector<16x16xf32> -> vector<16x16xf32>
    %40 = tpu.concatenate %18, %21, %24, %27, %30, %33, %36, %39 in 0 : vector<16x16xf32>, vector<16x16xf32>, vector<16x16xf32>, vector<16x16xf32>, vector<16x16xf32>, vector<16x16xf32>, vector<16x16xf32>, vector<16x16xf32> -> vector<128x16xf32>
    %41 = tpu.concatenate %13, %13, %13, %13, %15, %15, %15, %15 in 0 : vector<16x16xf32>, vector<16x16xf32>, vector<16x16xf32>, vector<16x16xf32>, vector<16x16xf32>, vector<16x16xf32>, vector<16x16xf32>, vector<16x16xf32> -> vector<128x16xf32>
    %cst_22 = arith.constant 0.000000e+00 : f32
    %42 = vector.broadcast %cst_22 : f32 to vector<128x16xf32>
    %43 = arith.cmpf one, %41, %42 : vector<128x16xf32>
    %44 = arith.mulf %40, %41 : vector<128x16xf32>
    %cst_23 = arith.constant -1.000000e+30 : f32
    %45 = vector.broadcast %cst_23 : f32 to vector<128x16xf32>
    %46 = arith.select %43, %44, %45 : vector<128x16xi1>, vector<128x16xf32>
    %cst_24 = arith.constant dense<0xFF800000> : vector<128xf32>
    %47 = vector.multi_reduction <maximumf>, %46, %cst_24 [1] : vector<128x16xf32> to vector<128xf32>
    %48 = vector.shape_cast %47 : vector<128xf32> to vector<128x1xf32>
    %49 = vector.broadcast %48 : vector<128x1xf32> to vector<128x16xf32>
    %50 = arith.subf %46, %49 : vector<128x16xf32>
    %51 = math.exp %50 : vector<128x16xf32>
    %cst_25 = arith.constant 0.000000e+00 : f32
    %52 = vector.broadcast %cst_25 : f32 to vector<128x16xf32>
    %53 = arith.select %43, %51, %52 : vector<128x16xi1>, vector<128x16xf32>
    %cst_26 = arith.constant dense<0.000000e+00> : vector<128xf32>
    %54 = vector.multi_reduction <add>, %53, %cst_26 [1] : vector<128x16xf32> to vector<128xf32>
    %55 = vector.shape_cast %54 : vector<128xf32> to vector<128x1xf32>
    %cst_27 = arith.constant 0.000000e+00 : f32
    %56 = vector.broadcast %cst_27 : f32 to vector<128x1xf32>
    %57 = arith.cmpf oeq, %55, %56 : vector<128x1xf32>
    %cst_28 = arith.constant 1.000000e+00 : f32
    %58 = vector.broadcast %cst_28 : f32 to vector<128x1xf32>
    %59 = arith.select %57, %58, %55 : vector<128x1xi1>, vector<128x1xf32>
    %60 = tpu.reciprocal %59 {approx = true} : vector<128x1xf32> -> vector<128x1xf32>
    %61 = vector.broadcast %60 : vector<128x1xf32> to vector<128x16xf32>
    %62 = arith.mulf %53, %61 : vector<128x16xf32>
    %63 = arith.truncf %62 : vector<128x16xf32> to vector<128x16xbf16>
    %64 = vector.extract_strided_slice %63 {offsets = [0, 0], sizes = [16, 16], strides = [1, 1]} : vector<128x16xbf16> to vector<16x16xbf16>
    %65 = vector.extract_strided_slice %11 {offsets = [0, 64], sizes = [16, 8], strides = [1, 1]} : vector<32x96xbf16> to vector<16x8xbf16>
    %cst_29 = arith.constant dense<0.000000e+00> : vector<16x8xf32>
    %66 = tpu.matmul %64, %65, %cst_29 {dimension_numbers = #tpu.dot_dimension_numbers<[1], [0], [0], [1], [0, 0, 1, 1], [], []>} : vector<16x16xbf16>, vector<16x8xbf16>, vector<16x8xf32> -> vector<16x8xf32>
    %67 = vector.extract_strided_slice %63 {offsets = [16, 0], sizes = [16, 16], strides = [1, 1]} : vector<128x16xbf16> to vector<16x16xbf16>
    %68 = vector.extract_strided_slice %11 {offsets = [0, 72], sizes = [16, 8], strides = [1, 1]} : vector<32x96xbf16> to vector<16x8xbf16>
    %cst_30 = arith.constant dense<0.000000e+00> : vector<16x8xf32>
    %69 = tpu.matmul %67, %68, %cst_30 {dimension_numbers = #tpu.dot_dimension_numbers<[1], [0], [0], [1], [0, 0, 1, 1], [], []>} : vector<16x16xbf16>, vector<16x8xbf16>, vector<16x8xf32> -> vector<16x8xf32>
    %70 = vector.extract_strided_slice %63 {offsets = [32, 0], sizes = [16, 16], strides = [1, 1]} : vector<128x16xbf16> to vector<16x16xbf16>
    %71 = vector.extract_strided_slice %11 {offsets = [0, 80], sizes = [16, 8], strides = [1, 1]} : vector<32x96xbf16> to vector<16x8xbf16>
    %cst_31 = arith.constant dense<0.000000e+00> : vector<16x8xf32>
    %72 = tpu.matmul %70, %71, %cst_31 {dimension_numbers = #tpu.dot_dimension_numbers<[1], [0], [0], [1], [0, 0, 1, 1], [], []>} : vector<16x16xbf16>, vector<16x8xbf16>, vector<16x8xf32> -> vector<16x8xf32>
    %73 = vector.extract_strided_slice %63 {offsets = [48, 0], sizes = [16, 16], strides = [1, 1]} : vector<128x16xbf16> to vector<16x16xbf16>
    %74 = vector.extract_strided_slice %11 {offsets = [0, 88], sizes = [16, 8], strides = [1, 1]} : vector<32x96xbf16> to vector<16x8xbf16>
    %cst_32 = arith.constant dense<0.000000e+00> : vector<16x8xf32>
    %75 = tpu.matmul %73, %74, %cst_32 {dimension_numbers = #tpu.dot_dimension_numbers<[1], [0], [0], [1], [0, 0, 1, 1], [], []>} : vector<16x16xbf16>, vector<16x8xbf16>, vector<16x8xf32> -> vector<16x8xf32>
    %76 = tpu.concatenate %66, %69, %72, %75 in 1 : vector<16x8xf32>, vector<16x8xf32>, vector<16x8xf32>, vector<16x8xf32> -> vector<16x32xf32>
    %77 = vector.extract_strided_slice %63 {offsets = [64, 0], sizes = [16, 16], strides = [1, 1]} : vector<128x16xbf16> to vector<16x16xbf16>
    %78 = vector.extract_strided_slice %11 {offsets = [16, 64], sizes = [16, 8], strides = [1, 1]} : vector<32x96xbf16> to vector<16x8xbf16>
    %cst_33 = arith.constant dense<0.000000e+00> : vector<16x8xf32>
    %79 = tpu.matmul %77, %78, %cst_33 {dimension_numbers = #tpu.dot_dimension_numbers<[1], [0], [0], [1], [0, 0, 1, 1], [], []>} : vector<16x16xbf16>, vector<16x8xbf16>, vector<16x8xf32> -> vector<16x8xf32>
    %80 = vector.extract_strided_slice %63 {offsets = [80, 0], sizes = [16, 16], strides = [1, 1]} : vector<128x16xbf16> to vector<16x16xbf16>
    %81 = vector.extract_strided_slice %11 {offsets = [16, 72], sizes = [16, 8], strides = [1, 1]} : vector<32x96xbf16> to vector<16x8xbf16>
    %cst_34 = arith.constant dense<0.000000e+00> : vector<16x8xf32>
    %82 = tpu.matmul %80, %81, %cst_34 {dimension_numbers = #tpu.dot_dimension_numbers<[1], [0], [0], [1], [0, 0, 1, 1], [], []>} : vector<16x16xbf16>, vector<16x8xbf16>, vector<16x8xf32> -> vector<16x8xf32>
    %83 = vector.extract_strided_slice %63 {offsets = [96, 0], sizes = [16, 16], strides = [1, 1]} : vector<128x16xbf16> to vector<16x16xbf16>
    %84 = vector.extract_strided_slice %11 {offsets = [16, 80], sizes = [16, 8], strides = [1, 1]} : vector<32x96xbf16> to vector<16x8xbf16>
    %cst_35 = arith.constant dense<0.000000e+00> : vector<16x8xf32>
    %85 = tpu.matmul %83, %84, %cst_35 {dimension_numbers = #tpu.dot_dimension_numbers<[1], [0], [0], [1], [0, 0, 1, 1], [], []>} : vector<16x16xbf16>, vector<16x8xbf16>, vector<16x8xf32> -> vector<16x8xf32>
    %86 = vector.extract_strided_slice %63 {offsets = [112, 0], sizes = [16, 16], strides = [1, 1]} : vector<128x16xbf16> to vector<16x16xbf16>
    %87 = vector.extract_strided_slice %11 {offsets = [16, 88], sizes = [16, 8], strides = [1, 1]} : vector<32x96xbf16> to vector<16x8xbf16>
    %cst_36 = arith.constant dense<0.000000e+00> : vector<16x8xf32>
    %88 = tpu.matmul %86, %87, %cst_36 {dimension_numbers = #tpu.dot_dimension_numbers<[1], [0], [0], [1], [0, 0, 1, 1], [], []>} : vector<16x16xbf16>, vector<16x8xbf16>, vector<16x8xf32> -> vector<16x8xf32>
    %89 = tpu.concatenate %79, %82, %85, %88 in 1 : vector<16x8xf32>, vector<16x8xf32>, vector<16x8xf32>, vector<16x8xf32> -> vector<16x32xf32>
    %90 = tpu.concatenate %76, %89 in 0 : vector<16x32xf32>, vector<16x32xf32> -> vector<32x32xf32>
    %91 = arith.truncf %90 : vector<32x32xf32> to vector<32x32xbf16>
    %c0_37 = arith.constant 0 : index
    %c0_38 = arith.constant 0 : index
    %92 = vector.load %arg5[%c0_37, %c0_38] : memref<32x32xbf16, #tpu.memory_space<vmem>>, vector<32x32xbf16>
    %cst_39 = arith.constant dense<0.000000e+00> : vector<32x32xf32>
    %93 = tpu.matmul %91, %92, %cst_39 {dimension_numbers = #tpu.dot_dimension_numbers<[1], [0], [0], [1], [0, 0, 1, 1], [], []>} : vector<32x32xbf16>, vector<32x32xbf16>, vector<32x32xf32> -> vector<32x32xf32>
    %c0_40 = arith.constant 0 : index
    %c0_41 = arith.constant 0 : index
    %94 = vector.load %arg6[%c0_40, %c0_41] : memref<1x32xf32, #tpu.memory_space<vmem>>, vector<1x32xf32>
    %95 = vector.broadcast %94 : vector<1x32xf32> to vector<32x32xf32>
    %96 = arith.addf %93, %95 : vector<32x32xf32>
    %97 = vector.extract_strided_slice %96 {offsets = [0, 0], sizes = [16, 32], strides = [1, 1]} : vector<32x32xf32> to vector<16x32xf32>
    %c0_42 = arith.constant 0 : index
    %c0_43 = arith.constant 0 : index
    %c0_44 = arith.constant 0 : index
    %98 = vector.load %arg7[%c0_42, %c0_43, %c0_44] : memref<2x16x32xf32, #tpu.memory_space<vmem>>, vector<1x16x32xf32>
    %99 = vector.shape_cast %98 : vector<1x16x32xf32> to vector<16x32xf32>
    %100 = vector.shape_cast %97 : vector<16x32xf32> to vector<1x16x32xf32>
    tpu.vector_store %arg7[%c0_42, %c0_43, %c0_44], %100 {strides = array<i32>} : memref<2x16x32xf32, #tpu.memory_space<vmem>>, vector<1x16x32xf32>,
    %101 = vector.extract_strided_slice %96 {offsets = [16, 0], sizes = [16, 32], strides = [1, 1]} : vector<32x32xf32> to vector<16x32xf32>
    %c1_45 = arith.constant 1 : index
    %c0_46 = arith.constant 0 : index
    %c0_47 = arith.constant 0 : index
    %102 = vector.load %arg7[%c1_45, %c0_46, %c0_47] : memref<2x16x32xf32, #tpu.memory_space<vmem>>, vector<1x16x32xf32>
    %103 = vector.shape_cast %102 : vector<1x16x32xf32> to vector<16x32xf32>
    %104 = vector.shape_cast %101 : vector<16x32xf32> to vector<1x16x32xf32>
    tpu.vector_store %arg7[%c1_45, %c0_46, %c0_47], %104 {strides = array<i32>} : memref<2x16x32xf32, #tpu.memory_space<vmem>>, vector<1x16x32xf32>,
    return
  }
  func.func @transform_0(%arg0: i32) -> (i32, i32, i32) {
    %c0_i32 = arith.constant 0 : i32
    %c0_i32_0 = arith.constant 0 : i32
    %c0_i32_1 = arith.constant 0 : i32
    return %arg0, %c0_i32, %c0_i32_0 : i32, i32, i32
  }
  func.func @transform_1(%arg0: i32) -> (i32, i32, i32) {
    %c0_i32 = arith.constant 0 : i32
    %c0_i32_0 = arith.constant 0 : i32
    %c0_i32_1 = arith.constant 0 : i32
    return %arg0, %c0_i32, %c0_i32_0 : i32, i32, i32
  }
  func.func @transform_2(%arg0: i32) -> (i32, i32) {
    %c0_i32 = arith.constant 0 : i32
    %c0_i32_0 = arith.constant 0 : i32
    %c0_i32_1 = arith.constant 0 : i32
    return %c0_i32, %c0_i32_0 : i32, i32
  }
  func.func @transform_3(%arg0: i32) -> (i32, i32) {
    %c0_i32 = arith.constant 0 : i32
    %c0_i32_0 = arith.constant 0 : i32
    %c0_i32_1 = arith.constant 0 : i32
    return %c0_i32, %c0_i32_0 : i32, i32
  }
  func.func @transform_4(%arg0: i32) -> (i32, i32) {
    %c0_i32 = arith.constant 0 : i32
    %c0_i32_0 = arith.constant 0 : i32
    %c0_i32_1 = arith.constant 0 : i32
    return %c0_i32, %c0_i32_0 : i32, i32
  }
  func.func @transform_5(%arg0: i32) -> (i32, i32) {
    %c0_i32 = arith.constant 0 : i32
    %c0_i32_0 = arith.constant 0 : i32
    %c0_i32_1 = arith.constant 0 : i32
    return %c0_i32, %c0_i32_0 : i32, i32
  }
  func.func @transform_6(%arg0: i32) -> (i32, i32, i32) {
    %c0_i32 = arith.constant 0 : i32
    %c0_i32_0 = arith.constant 0 : i32
    %c0_i32_1 = arith.constant 0 : i32
    return %arg0, %c0_i32, %c0_i32_0 : i32, i32, i32
  }
}

</mosaic_0001>

<llo_original>
// kernel: sparse_attention.1
$region0: #{sparse_attention.1}
  #allocation0 [shape = 'u32[]', space=smem, size = 0x4, offset = 0x4, fixed_abs, tag = 'smem constant byte address 0x4 - core index']
  #allocation1 [shape = 'u32[144,128]{1,0:T(1,128)}', space=vmem, size = 0x12000, scoped, tag = 'internal scratch']
  %s0 = inlined_call_operand.hbm [shape: f32[4,16,32], index: 0, kind: input, shape index: {}]
  %s1 = inlined_call_operand.hbm [shape: f32[4,16,16], index: 1, kind: input, shape index: {}]
  %s2 = inlined_call_operand.hbm [shape: bf16[32,96], index: 2, kind: input, shape index: {}]
  %s3 = inlined_call_operand.vmem [shape: f32[1,96], index: 3, kind: input, shape index: {}]
  %s4 = inlined_call_operand.hbm [shape: bf16[32,32], index: 4, kind: input, shape index: {}]
  %s5 = inlined_call_operand.vmem [shape: f32[1,32], index: 5, kind: input, shape index: {}]
  %s6 = inlined_call_operand.hbm [shape: f32[4,16,32], index: 6, kind: output, shape index: {}]
  %s7 = sld [smem:[#allocation0]]
  $region73: #{sparse_attention.1} parent=0
    _
  %s9 = ssub.s32 1, %s7
  %s10 = scalar_select 0, %s9, %s7
  $region1: #{sparse_attention.1} parent=0
    #allocation2 [shape = 'u8[32768]{0}', space=vmem, size = 0x8000, scoped, tag = 'input window, operand 0']
    #allocation3 [shape = 's32[2]{0}', space=sflag, size = 0x8, scoped, tag = 'scoped memory for sparse_attention.1']
    #allocation4 [shape = 's32[2]{0}', space=sflag, size = 0x8, scoped, tag = 'scoped memory for sparse_attention.1']
    #allocation5 [shape = 'u8[32768]{0}', space=vmem, size = 0x8000, scoped, tag = 'input window, operand 1']
    #allocation6 [shape = 's32[2]{0}', space=sflag, size = 0x8, scoped, tag = 'scoped memory for sparse_attention.1']
    #allocation7 [shape = 'u8[8192]{0}', space=vmem, size = 0x2000, scoped, tag = 'input window, operand 2, single buffered']
    #allocation8 [shape = 'u8[8192]{0}', space=vmem, size = 0x2000, scoped, tag = 'input window, operand 4, single buffered']
    #allocation9 [shape = 's32[1]{0}', space=sflag, size = 0x4, scoped, tag = 'scoped memory for sparse_attention.1']
    #allocation10 [shape = 'u8[32768]{0}', space=vmem, size = 0x8000, scoped, tag = 'output window, operand 0']
    %11 = vsyncpa [#allocation3], 0
    %s12 = scalar_lea.sflag [#allocation3], 1
    %13 = vsyncpa %s12, 0
    %14 = vsyncpa [#allocation6], 0
    %s15 = scalar_lea.sflag [#allocation6], 1
    %16 = vsyncpa %s15, 0
    %17 = vsyncpa [#allocation9], 0
    %18 = vsyncpa [#allocation4], 0
    %s19 = scalar_lea.sflag [#allocation4], 1
    %20 = vsyncpa %s19, 0
    loop: start=0, step=1, limit=4
    $region2: #{sparse_attention.1} parent=1 // loop_pre_header
      _
    $region3: #{sparse_attention.1} parent=1 // loop_header
      %s22 = sphi 0, %s26
      %p23 = scmp.ge.s32.totalorder %s22, 4
      %s32 = sphi 0, %s34
      %s35 = sphi 0, %s32
      %s36 = sphi 0, %s35
      %s52 = sphi 0, %s36
      %s58 = sphi 0, %s60
      %s61 = sphi 0, %s58
      %s62 = sphi 0, %s61
      %s78 = sphi 0, %s62
      %s82 = sphi 0, %s82
      %s84 = sphi 0, %s82
      %s85 = sphi 0, %s84
      %s99 = sphi 0, %s85
      %s103 = sphi 0, %s103
      %s105 = sphi 0, %s103
      %s106 = sphi 0, %s105
      %s120 = sphi 0, %s106
      %s124 = sphi 0, %s124
      %s126 = sphi 0, %s124
      %s127 = sphi 0, %s126
      %s141 = sphi 0, %s127
      %s145 = sphi 0, %s145
      %s147 = sphi 0, %s145
      %s148 = sphi 0, %s147
      %s162 = sphi 0, %s148
      %s168 = sphi 0, %s170
      %s171 = sphi 0, %s168
      %s172 = sphi 0, %s171
      %s188 = sphi 0, %s172
    $region4: #{sparse_attention.1} parent=1 // loop_header_branch
      %25 = sbr.rel (%p23) target = $region8
    $region5: #{sparse_attention.1} parent=1 // loop_body
      %s27 = ssub.s32 %s22, 1
      %s28 = ssub.s32 %s22, 2
      %s29 = sadd.s32 %s22, 1
      %s30 = ssub.s32 %s22, %s29
      %p31 = scmp.eq.s32.totalorder %s30, 0
      %s33 = sadd.s32 %s32, 1
      %s34 = scalar_select %p31, %s32, %s33
      %p37 = pneg %p31
      %p38 = scmp.eq.s32.totalorder %s22, 1
      %p39 = por %p37, %p38
      %p40 = scmp.ne.s32.totalorder %s32, %s35
      %p41 = scmp.eq.s32.totalorder %s22, 0
      %p42 = por %p40, %p41
      %p43 = scmp.ne.s32.totalorder %s32, %s35
      %p44 = scmp.eq.s32.totalorder %s27, 1
      %p45 = por %p43, %p44
      %p46 = scmp.ne.s32.totalorder %s35, %s36
      %p47 = scmp.eq.s32.totalorder %s27, 0
      %p48 = por %p46, %p47
      %p49 = scmp.ne.s32.totalorder %s35, %s36
      %p50 = scmp.eq.s32.totalorder %s28, 1
      %p51 = por %p49, %p50
      %p53 = scmp.ne.s32.totalorder %s36, %s52
      %p54 = scmp.eq.s32.totalorder %s28, 0
      %p55 = por %p53, %p54
      %s56 = ssub.s32 %s22, %s29
      %p57 = scmp.eq.s32.totalorder %s56, 0
      %s59 = sadd.s32 %s58, 1
      %s60 = scalar_select %p57, %s58, %s59
      %p63 = pneg %p57
      %p64 = scmp.eq.s32.totalorder %s22, 1
      %p65 = por %p63, %p64
      %p66 = scmp.ne.s32.totalorder %s58, %s61
      %p67 = scmp.eq.s32.totalorder %s22, 0
      %p68 = por %p66, %p67
      %p69 = scmp.ne.s32.totalorder %s58, %s61
      %p70 = scmp.eq.s32.totalorder %s27, 1
      %p71 = por %p69, %p70
      %p72 = scmp.ne.s32.totalorder %s61, %s62
      %p73 = scmp.eq.s32.totalorder %s27, 0
      %p74 = por %p72, %p73
      %p75 = scmp.ne.s32.totalorder %s61, %s62
      %p76 = scmp.eq.s32.totalorder %s28, 1
      %p77 = por %p75, %p76
      %p79 = scmp.ne.s32.totalorder %s62, %s78
      %p80 = scmp.eq.s32.totalorder %s28, 0
      %p81 = por %p79, %p80
      %s83 = sadd.s32 %s82, 1
      %p86 = scmp.eq.s32.totalorder %s22, 1
      %p87 = scmp.ne.s32.totalorder %s82, %s84
      %p88 = scmp.eq.s32.totalorder %s22, 0
      %p89 = por %p87, %p88
      %p90 = scmp.ne.s32.totalorder %s82, %s84
      %p91 = scmp.eq.s32.totalorder %s27, 1
      %p92 = por %p90, %p91
      %p93 = scmp.ne.s32.totalorder %s84, %s85
      %p94 = scmp.eq.s32.totalorder %s27, 0
      %p95 = por %p93, %p94
      %p96 = scmp.ne.s32.totalorder %s84, %s85
      %p97 = scmp.eq.s32.totalorder %s28, 1
      %p98 = por %p96, %p97
      %p100 = scmp.ne.s32.totalorder %s85, %s99
      %p101 = scmp.eq.s32.totalorder %s28, 0
      %p102 = por %p100, %p101
      %s104 = sadd.s32 %s103, 1
      %p107 = scmp.eq.s32.totalorder %s22, 1
      %p108 = scmp.ne.s32.totalorder %s103, %s105
      %p109 = scmp.eq.s32.totalorder %s22, 0
      %p110 = por %p108, %p109
      %p111 = scmp.ne.s32.totalorder %s103, %s105
      %p112 = scmp.eq.s32.totalorder %s27, 1
      %p113 = por %p111, %p112
      %p114 = scmp.ne.s32.totalorder %s105, %s106
      %p115 = scmp.eq.s32.totalorder %s27, 0
      %p116 = por %p114, %p115
      %p117 = scmp.ne.s32.totalorder %s105, %s106
      %p118 = scmp.eq.s32.totalorder %s28, 1
      %p119 = por %p117, %p118
      %p121 = scmp.ne.s32.totalorder %s106, %s120
      %p122 = scmp.eq.s32.totalorder %s28, 0
      %p123 = por %p121, %p122
      %s125 = sadd.s32 %s124, 1
      %p128 = scmp.eq.s32.totalorder %s22, 1
      %p129 = scmp.ne.s32.totalorder %s124, %s126
      %p130 = scmp.eq.s32.totalorder %s22, 0
      %p131 = por %p129, %p130
      %p132 = scmp.ne.s32.totalorder %s124, %s126
      %p133 = scmp.eq.s32.totalorder %s27, 1
      %p134 = por %p132, %p133
      %p135 = scmp.ne.s32.totalorder %s126, %s127
      %p136 = scmp.eq.s32.totalorder %s27, 0
      %p137 = por %p135, %p136
      %p138 = scmp.ne.s32.totalorder %s126, %s127
      %p139 = scmp.eq.s32.totalorder %s28, 1
      %p140 = por %p138, %p139
      %p142 = scmp.ne.s32.totalorder %s127, %s141
      %p143 = scmp.eq.s32.totalorder %s28, 0
      %p144 = por %p142, %p143
      %s146 = sadd.s32 %s145, 1
      %p149 = scmp.eq.s32.totalorder %s22, 1
      %p150 = scmp.ne.s32.totalorder %s145, %s147
      %p151 = scmp.eq.s32.totalorder %s22, 0
      %p152 = por %p150, %p151
      %p153 = scmp.ne.s32.totalorder %s145, %s147
      %p154 = scmp.eq.s32.totalorder %s27, 1
      %p155 = por %p153, %p154
      %p156 = scmp.ne.s32.totalorder %s147, %s148
      %p157 = scmp.eq.s32.totalorder %s27, 0
      %p158 = por %p156, %p157
      %p159 = scmp.ne.s32.totalorder %s147, %s148
      %p160 = scmp.eq.s32.totalorder %s28, 1
      %p161 = por %p159, %p160
      %p163 = scmp.ne.s32.totalorder %s148, %s162
      %p164 = scmp.eq.s32.totalorder %s28, 0
      %p165 = por %p163, %p164
      %s166 = ssub.s32 %s22, %s29
      %p167 = scmp.eq.s32.totalorder %s166, 0
      %s169 = sadd.s32 %s168, 1
      %s170 = scalar_select %p167, %s168, %s169
      %p173 = pneg %p167
      %p174 = scmp.eq.s32.totalorder %s22, 1
      %p175 = por %p173, %p174
      %p176 = scmp.ne.s32.totalorder %s168, %s171
      %p177 = scmp.eq.s32.totalorder %s22, 0
      %p178 = por %p176, %p177
      %p179 = scmp.ne.s32.totalorder %s168, %s171
      %p180 = scmp.eq.s32.totalorder %s27, 1
      %p181 = por %p179, %p180
      %p182 = scmp.ne.s32.totalorder %s171, %s172
      %p183 = scmp.eq.s32.totalorder %s27, 0
      %p184 = por %p182, %p183
      %p185 = scmp.ne.s32.totalorder %s171, %s172
      %p186 = scmp.eq.s32.totalorder %s28, 1
      %p187 = por %p185, %p186
      %p189 = scmp.ne.s32.totalorder %s172, %s188
      %p190 = scmp.eq.s32.totalorder %s28, 0
      %p191 = por %p189, %p190
      %p192 = scmp.le.s32.totalorder 1, %s22
      %p193 = scmp.lt.s32.totalorder %s22, 3
      %p194 = pnand %p192, %p193
      %p195 = pneg %p194
      // Predicated region
      $region9: #{sparse_attention.1} parent=5 // pred_check
        _
      $region10: #{sparse_attention.1} parent=5 // pred_check_branch
        %197 = sbr.rel (%p194) target = $region12
      $region11: #{sparse_attention.1} parent=5 // pred_region
        %s198 = ssub.s32 %s22, 1
        // Predicated region
        $region13: #{sparse_attention.1} parent=11 // pred_check
          %p199 = pneg %p95
        $region14: #{sparse_attention.1} parent=11 // pred_check_branch
          %201 = sbr.rel (%p199) target = $region16
        $region15: #{sparse_attention.1} parent=11 // pred_region
          %s203 = ssub.s32 256, 256
          %204 = vsyncadd [#allocation6], %s203
          %s205 = sshll.u32 [#allocation7], 4
          %s206 = int_to_ptr.vmem [resolvable:$true] %s205
          %211 = dma.hbm_to_vmem [thread:$0]  %s2, 256, %s206, [#allocation6], 64, 64, 4
        $region16: #{sparse_attention.1} parent=11 // pred_fallthru
          _
        // Predicated region
        $region17: #{sparse_attention.1} parent=11 // pred_check
          %p212 = pneg %p116
        $region18: #{sparse_attention.1} parent=11 // pred_check_branch
          %214 = sbr.rel (%p212) target = $region20
        $region19: #{sparse_attention.1} parent=11 // pred_region
          _
        $region20: #{sparse_attention.1} parent=11 // pred_fallthru
          _
        // Predicated region
        $region21: #{sparse_attention.1} parent=11 // pred_check
          %p215 = pneg %p137
        $region22: #{sparse_attention.1} parent=11 // pred_check_branch
          %217 = sbr.rel (%p215) target = $region24
        $region23: #{sparse_attention.1} parent=11 // pred_region
          %s219 = ssub.s32 256, 256
          %220 = vsyncadd [#allocation9], %s219
          %s221 = sshll.u32 [#allocation8], 4
          %s222 = int_to_ptr.vmem [resolvable:$true] %s221
          %227 = dma.hbm_to_vmem [thread:$0]  %s4, 256, %s222, [#allocation9], 64, 64, 4
        $region24: #{sparse_attention.1} parent=11 // pred_fallthru
          _
        // Predicated region
        $region25: #{sparse_attention.1} parent=11 // pred_check
          %p228 = pneg %p158
        $region26: #{sparse_attention.1} parent=11 // pred_check_branch
          %230 = sbr.rel (%p228) target = $region28
        $region27: #{sparse_attention.1} parent=11 // pred_region
          _
        $region28: #{sparse_attention.1} parent=11 // pred_fallthru
          _
      $region12: #{sparse_attention.1} parent=5 // pred_fallthru
        _
      %p231 = scmp.lt.s32.totalorder %s22, 2
      // Predicated region
      $region29: #{sparse_attention.1} parent=5 // pred_check
        %p232 = pneg %p231
      $region30: #{sparse_attention.1} parent=5 // pred_check_branch
        %234 = sbr.rel (%p232) target = $region32
      $region31: #{sparse_attention.1} parent=5 // pred_region
        // Predicated region
        $region33: #{sparse_attention.1} parent=31 // pred_check
          %p235 = pneg %p42
        $region34: #{sparse_attention.1} parent=31 // pred_check_branch
          %237 = sbr.rel (%p235) target = $region36
        $region35: #{sparse_attention.1} parent=31 // pred_region
          %s238 = sand.u32 %s32, 1
          %s239 = scalar_lea.sflag [#allocation3], %s238
          %s240 = sand.u32 %s32, 1
          %s241 = smul.addr %s240, 32
          %s242 = scalar_lea.vmem [#allocation2], %s241
          %s243 = smul.u32 2, %s22
          %s245 = ssub.s32 512, 512
          %246 = vsyncadd %s239, %s245
          %s247 = smul.addr %s243, 2
          %s248 = smul.addr %s247, 128
          %s249 = scalar_lea.hbm %s0, %s248
          %s250 = sshll.u32 %s242, 4
          %s251 = int_to_ptr.vmem [resolvable:$true] %s250
          %256 = dma.hbm_to_vmem [thread:$0]  %s249, 512, %s251, %s239, 128, 128, 8
        $region36: #{sparse_attention.1} parent=31 // pred_fallthru
          _
        // Predicated region
        $region37: #{sparse_attention.1} parent=31 // pred_check
          %p257 = pneg %p68
        $region38: #{sparse_attention.1} parent=31 // pred_check_branch
          %259 = sbr.rel (%p257) target = $region40
        $region39: #{sparse_attention.1} parent=31 // pred_region
          %s260 = sand.u32 %s22, 1
          %s261 = scalar_lea.sflag [#allocation6], %s260
          %s262 = sand.u32 %s58, 1
          %s263 = smul.addr %s262, 32
          %s264 = scalar_lea.vmem [#allocation5], %s263
          %s265 = smul.u32 2, %s22
          %s267 = ssub.s32 512, 512
          %268 = vsyncadd %s261, %s267
          %s269 = smul.addr %s265, 2
          %s270 = smul.addr %s269, 128
          %s271 = scalar_lea.hbm %s1, %s270
          %s272 = sshll.u32 %s264, 4
          %s273 = int_to_ptr.vmem [resolvable:$true] %s272
          %278 = dma.hbm_to_vmem [thread:$0]  %s271, 512, %s273, %s261, 128, 128, 8
        $region40: #{sparse_attention.1} parent=31 // pred_fallthru
          _
      $region32: #{sparse_attention.1} parent=5 // pred_fallthru
        _
      %p279 = scmp.le.s32.totalorder 1, %s22
      %p280 = scmp.lt.s32.totalorder %s22, 3
      %p281 = pnand %p279, %p280
      %p282 = pneg %p281
      // Predicated region
      $region41: #{sparse_attention.1} parent=5 // pred_check
        _
      $region42: #{sparse_attention.1} parent=5 // pred_check_branch
        %284 = sbr.rel (%p281) target = $region44
      $region43: #{sparse_attention.1} parent=5 // pred_region
        %s285 = ssub.s32 %s22, 1
        %s286 = sand.u32 %s35, 1
        %s287 = scalar_lea.sflag [#allocation3], %s286
        %s288 = sand.u32 %s35, 1
        %s289 = smul.addr %s288, 32
        %s290 = scalar_lea.vmem [#allocation2], %s289
        // Predicated region
        $region45: #{sparse_attention.1} parent=43 // pred_check
          %p291 = pneg %p48
        $region46: #{sparse_attention.1} parent=43 // pred_check_branch
          %293 = sbr.rel (%p291) target = $region48
        $region47: #{sparse_attention.1} parent=43 // pred_region
          %294 = dma.done %s287, 512
        $region48: #{sparse_attention.1} parent=43 // pred_fallthru
          _
        %s295 = sand.u32 %s27, 1
        %s296 = scalar_lea.sflag [#allocation6], %s295
        %s297 = sand.u32 %s61, 1
        %s298 = smul.addr %s297, 32
        %s299 = scalar_lea.vmem [#allocation5], %s298
        // Predicated region
        $region49: #{sparse_attention.1} parent=43 // pred_check
          %p300 = pneg %p74
        $region50: #{sparse_attention.1} parent=43 // pred_check_branch
          %302 = sbr.rel (%p300) target = $region52
        $region51: #{sparse_attention.1} parent=43 // pred_region
          %303 = dma.done %s296, 512
        $region52: #{sparse_attention.1} parent=43 // pred_fallthru
          _
        // Predicated region
        $region53: #{sparse_attention.1} parent=43 // pred_check
          %p304 = pneg %p95
        $region54: #{sparse_attention.1} parent=43 // pred_check_branch
          %306 = sbr.rel (%p304) target = $region56
        $region55: #{sparse_attention.1} parent=43 // pred_region
          %307 = dma.done [#allocation6], 256
        $region56: #{sparse_attention.1} parent=43 // pred_fallthru
          _
        // Predicated region
        $region57: #{sparse_attention.1} parent=43 // pred_check
          %p308 = pneg %p137
        $region58: #{sparse_attention.1} parent=43 // pred_check_branch
          %310 = sbr.rel (%p308) target = $region60
        $region59: #{sparse_attention.1} parent=43 // pred_region
          %311 = dma.done [#allocation9], 256
        $region60: #{sparse_attention.1} parent=43 // pred_fallthru
          _
        %s312 = sand.u32 %s35, 1
        %s313 = scalar_lea.sflag [#allocation3], %s312
        %s314 = sand.u32 %s35, 1
        %s315 = smul.addr %s314, 32
        %s316 = scalar_lea.vmem [#allocation2], %s315
        %p317 = pneg %p48
        %p318 = pneg %p45
        %s319 = sand.u32 %s27, 1
        %s320 = scalar_lea.sflag [#allocation6], %s319
        %s321 = sand.u32 %s61, 1
        %s322 = smul.addr %s321, 32
        %s323 = scalar_lea.vmem [#allocation5], %s322
        %p324 = pneg %p74
        %p325 = pneg %p71
        %p326 = pneg %p95
        %p327 = pneg %p92
        %p328 = pneg %p116
        %p329 = pneg %p113
        %p330 = pneg %p137
        %p331 = pneg %p134
        %p332 = pneg %p158
        %p333 = pneg %p155
        %p334 = pneg %p184
        %p335 = pneg %p181
        %s336 = sand.u32 %s171, 1
        %s337 = scalar_lea.sflag [#allocation4], %s336
        %s338 = sand.u32 %s171, 1
        %s339 = smul.addr %s338, 32
        %s340 = scalar_lea.vmem [#allocation10], %s339
        %s341 = smul.u32 2, %s27
        %s342 = smul.u32 2, %s27
        %s343 = smul.u32 2, %s27
        %v345 = vld [vmem:[%s290] sm:$0xff]
        %v346 = vld [vmem:[%s290 + $0x8] sm:$0xff]
        %s347 = scalar_lea.vmem %s290, 16 [#allocation2]
        %v348 = vld [vmem:[%s347] sm:$0xff]
        %v349 = vld [vmem:[%s347 + $0x8] sm:$0xff]
        %v350 = vpack.c.bf16 %v346, %v345
        %v351 = vpack.c.bf16 %v349, %v348
        %v352 = vld [vmem:[#allocation7] sm:$0xf]
        %v353 = vld [vmem:[#allocation7 + $0x4] sm:$0xf]
        %v354 = vld [vmem:[#allocation7 + $0x8] sm:$0xf]
        %v355 = vld [vmem:[#allocation7 + $0xc] sm:$0xf]
        %v356 = vld [vmem:[%s3] sm:$0x1]
        %v358 = vlaneseq
        %v359 = vshrl.u32 %v358, 7
        %v360 = vsub.s32 0, %v359
        %v361 = vrot.slane %v356, %v360
        %v367 = vunpack.c.l.b16 %v352
        %v368 = vunpack.c.l.b16 %v353
        %v369 = vunpack.c.l.b16 %v354
        %v370 = vunpack.c.l.b16 %v355
        %v371 = vpack.c.b16 %v368, %v367
        %v372 = vpack.c.b16 %v370, %v369
        %vm375 = vcmask 261120
        %v377 = vsel %vm375, %v350, 0
        %v380 = vsel %vm375, %v351, 0
        %382 = vmatprep.subr.bf16.mxu0 0
        %383 = vmatpush1.bf16.msra.mxu0 %v371
        %384 = vmatprep.subr.bf16.mxu0 0
        %385 = vmatpush1.bf16.msra.mxu0 %v372
        %386 = vmatprep.subr.bf16.mxu0 0
        %387 = vmatpush1.bf16.msra.mxu0 0
        %388 = vmatprep.subr.bf16.mxu0 0
        %389 = vmatpush1.bf16.msra.mxu0 0
        %390 = vmatprep.subr.bf16.mxu0 0
        %391 = vmatpush1.bf16.msra.mxu0 0
        %392 = vmatprep.subr.bf16.mxu0 0
        %393 = vmatpush1.bf16.msra.mxu0 0
        %394 = vmatprep.subr.bf16.mxu0 0
        %395 = vmatpush1.bf16.msra.mxu0 0
        %396 = vmatprep.subr.bf16.mxu0 0
        %397 = vmatpush1.bf16.msra.mxu0 0
        %398 = vmatprep.subr.bf16.mxu0 0
        %399 = vmatpush1.bf16.msra.mxu0 0
        %400 = vmatprep.subr.bf16.mxu0 0
        %401 = vmatpush1.bf16.msra.mxu0 0
        %402 = vmatprep.subr.bf16.mxu0 0
        %403 = vmatpush1.bf16.msra.mxu0 0
        %404 = vmatprep.subr.bf16.mxu0 0
        %405 = vmatpush1.bf16.msra.mxu0 0
        %406 = vmatprep.subr.bf16.mxu0 0
        %407 = vmatpush1.bf16.msra.mxu0 0
        %408 = vmatprep.subr.bf16.mxu0 0
        %409 = vmatpush1.bf16.msra.mxu0 0
        %410 = vmatprep.subr.bf16.mxu0 0
        %411 = vmatpush1.bf16.msra.mxu0 0
        %412 = vmatprep.subr.bf16.mxu0 0
        %413 = vmatpush1.bf16.msra.mxu0 0
        %414 = vmatprep.mubr.bf16.mxu0 0
        %415 = vmatmul.mubr.bf16.gmra.mrb[0].mxu0 %v377
        %v416 = vpop.f32.mrb[0].mxu0
        %v417 = vadd.f32 %v361, %v416
        %v418 = vpop.f32.mrb[0].mxu0
        %v419 = vpop.f32.mrb[0].mxu0
        %v420 = vadd.f32 %v361, %v419
        %v421 = vpop.f32.mrb[0].mxu0
        %422 = vmatprep.mubr.bf16.mxu0 0
        %423 = vmatmul.mubr.bf16.gmra.mrb[0].mxu0 %v380
        %v424 = vpop.f32.mrb[0].mxu0
        %v425 = vadd.f32 %v361, %v424
        %v426 = vpop.f32.mrb[0].mxu0
        %v427 = vpop.f32.mrb[0].mxu0
        %v428 = vadd.f32 %v361, %v427
        %v429 = vpop.f32.mrb[0].mxu0
        %430 = vdwg.mxu0
        %v431 = vpack.c.bf16 %v420, %v417
        %v432 = vpack.c.bf16 %v428, %v425
        %v433 = vld [vmem:[%s299] sm:$0xff]
        %v434 = vld [vmem:[%s299 + $0x8] sm:$0xff]
        %s435 = scalar_lea.vmem %s299, 16 [#allocation5]
        %v436 = vld [vmem:[%s435] sm:$0xff]
        %v437 = vld [vmem:[%s435 + $0x8] sm:$0xff]
        %439 = vrot.lane.b32.xlu0 %v431, 96
        %v440 = vpop.permute.xlu0 %439
        %vm441 = vcmask 64512
        %v443 = vsel %vm441, %v431, 0
        %v446 = vsel %vm441, %v440, 0
        %448 = vmatprep.subr.bf16.mxu0 0
        %449 = vmatpush1.bf16.xpose.msra.mxu0 %v446
        %450 = vmatprep.subr.bf16.mxu0 0
        %451 = vmatpush1.bf16.xpose.msra.mxu0 0
        %452 = vmatprep.subr.bf16.mxu0 0
        %453 = vmatpush1.bf16.xpose.msra.mxu0 0
        %454 = vmatprep.subr.bf16.mxu0 0
        %455 = vmatpush1.bf16.xpose.msra.mxu0 0
        %456 = vmatprep.subr.bf16.mxu0 0
        %457 = vmatpush1.bf16.xpose.msra.mxu0 0
        %458 = vmatprep.subr.bf16.mxu0 0
        %459 = vmatpush1.bf16.xpose.msra.mxu0 0
        %460 = vmatprep.subr.bf16.mxu0 0
        %461 = vmatpush1.bf16.xpose.msra.mxu0 0
        %462 = vmatprep.subr.bf16.mxu0 0
        %463 = vmatpush1.bf16.xpose.msra.mxu0 0
        %464 = vmatprep.subr.bf16.mxu0 0
        %465 = vmatpush1.bf16.xpose.msra.mxu0 0
        %466 = vmatprep.subr.bf16.mxu0 0
        %467 = vmatpush1.bf16.xpose.msra.mxu0 0
        %468 = vmatprep.subr.bf16.mxu0 0
        %469 = vmatpush1.bf16.xpose.msra.mxu0 0
        %470 = vmatprep.subr.bf16.mxu0 0
        %471 = vmatpush1.bf16.xpose.msra.mxu0 0
        %472 = vmatprep.subr.bf16.mxu0 0
        %473 = vmatpush1.bf16.xpose.msra.mxu0 0
        %474 = vmatprep.subr.bf16.mxu0 0
        %475 = vmatpush1.bf16.xpose.msra.mxu0 0
        %476 = vmatprep.subr.bf16.mxu0 0
        %477 = vmatpush1.bf16.xpose.msra.mxu0 0
        %478 = vmatprep.subr.bf16.mxu0 0
        %479 = vmatpush1.bf16.xpose.msra.mxu0 0
        %480 = vmatprep.mubr.bf16.mxu0 0
        %481 = vmatmul.mubr.bf16.gmra.mrb[0].mxu0 %v443
        %v482 = vpop.f32.mrb[0].mxu0
        %v483 = vadd.f32 0.0, %v482
        %v484 = vpop.f32.mrb[0].mxu0
        %v485 = vpop.f32.mrb[0].mxu0
        %v486 = vadd.f32 0.0, %v485
        %v487 = vpop.f32.mrb[0].mxu0
        %488 = vdwg.mxu0
        %489 = vrot.lane.b32.xlu0 %v431, 120
        %v490 = vpop.permute.xlu0 %489
        %491 = vrot.lane.b32.xlu0 %v431, 88
        %v492 = vpop.permute.xlu0 %491
        %v494 = vsel %vm441, %v490, 0
        %v497 = vsel %vm441, %v492, 0
        %499 = vmatprep.subr.bf16.mxu0 0
        %500 = vmatpush1.bf16.xpose.msra.mxu0 %v497
        %501 = vmatprep.subr.bf16.mxu0 0
        %502 = vmatpush1.bf16.xpose.msra.mxu0 0
        %503 = vmatprep.subr.bf16.mxu0 0
        %504 = vmatpush1.bf16.xpose.msra.mxu0 0
        %505 = vmatprep.subr.bf16.mxu0 0
        %506 = vmatpush1.bf16.xpose.msra.mxu0 0
        %507 = vmatprep.subr.bf16.mxu0 0
        %508 = vmatpush1.bf16.xpose.msra.mxu0 0
        %509 = vmatprep.subr.bf16.mxu0 0
        %510 = vmatpush1.bf16.xpose.msra.mxu0 0
        %511 = vmatprep.subr.bf16.mxu0 0
        %512 = vmatpush1.bf16.xpose.msra.mxu0 0
        %513 = vmatprep.subr.bf16.mxu0 0
        %514 = vmatpush1.bf16.xpose.msra.mxu0 0
        %515 = vmatprep.subr.bf16.mxu0 0
        %516 = vmatpush1.bf16.xpose.msra.mxu0 0
        %517 = vmatprep.subr.bf16.mxu0 0
        %518 = vmatpush1.bf16.xpose.msra.mxu0 0
        %519 = vmatprep.subr.bf16.mxu0 0
        %520 = vmatpush1.bf16.xpose.msra.mxu0 0
        %521 = vmatprep.subr.bf16.mxu0 0
        %522 = vmatpush1.bf16.xpose.msra.mxu0 0
        %523 = vmatprep.subr.bf16.mxu0 0
        %524 = vmatpush1.bf16.xpose.msra.mxu0 0
        %525 = vmatprep.subr.bf16.mxu0 0
        %526 = vmatpush1.bf16.xpose.msra.mxu0 0
        %527 = vmatprep.subr.bf16.mxu0 0
        %528 = vmatpush1.bf16.xpose.msra.mxu0 0
        %529 = vmatprep.subr.bf16.mxu0 0
        %530 = vmatpush1.bf16.xpose.msra.mxu0 0
        %531 = vmatprep.mubr.bf16.mxu0 0
        %532 = vmatmul.mubr.bf16.gmra.mrb[0].mxu0 %v494
        %v533 = vpop.f32.mrb[0].mxu0
        %v534 = vadd.f32 0.0, %v533
        %v535 = vpop.f32.mrb[0].mxu0
        %v536 = vpop.f32.mrb[0].mxu0
        %v537 = vadd.f32 0.0, %v536
        %v538 = vpop.f32.mrb[0].mxu0
        %539 = vdwg.mxu0
        %540 = vrot.lane.b32.xlu0 %v431, 112
        %v541 = vpop.permute.xlu0 %540
        %542 = vrot.lane.b32.xlu0 %v431, 80
        %v543 = vpop.permute.xlu0 %542
        %v545 = vsel %vm441, %v541, 0
        %v548 = vsel %vm441, %v543, 0
        %550 = vmatprep.subr.bf16.mxu0 0
        %551 = vmatpush1.bf16.xpose.msra.mxu0 %v548
        %552 = vmatprep.subr.bf16.mxu0 0
        %553 = vmatpush1.bf16.xpose.msra.mxu0 0
        %554 = vmatprep.subr.bf16.mxu0 0
        %555 = vmatpush1.bf16.xpose.msra.mxu0 0
        %556 = vmatprep.subr.bf16.mxu0 0
        %557 = vmatpush1.bf16.xpose.msra.mxu0 0
        %558 = vmatprep.subr.bf16.mxu0 0
        %559 = vmatpush1.bf16.xpose.msra.mxu0 0
        %560 = vmatprep.subr.bf16.mxu0 0
        %561 = vmatpush1.bf16.xpose.msra.mxu0 0
        %562 = vmatprep.subr.bf16.mxu0 0
        %563 = vmatpush1.bf16.xpose.msra.mxu0 0
        %564 = vmatprep.subr.bf16.mxu0 0
        %565 = vmatpush1.bf16.xpose.msra.mxu0 0
        %566 = vmatprep.subr.bf16.mxu0 0
        %567 = vmatpush1.bf16.xpose.msra.mxu0 0
        %568 = vmatprep.subr.bf16.mxu0 0
        %569 = vmatpush1.bf16.xpose.msra.mxu0 0
        %570 = vmatprep.subr.bf16.mxu0 0
        %571 = vmatpush1.bf16.xpose.msra.mxu0 0
        %572 = vmatprep.subr.bf16.mxu0 0
        %573 = vmatpush1.bf16.xpose.msra.mxu0 0
        %574 = vmatprep.subr.bf16.mxu0 0
        %575 = vmatpush1.bf16.xpose.msra.mxu0 0
        %576 = vmatprep.subr.bf16.mxu0 0
        %577 = vmatpush1.bf16.xpose.msra.mxu0 0
        %578 = vmatprep.subr.bf16.mxu0 0
        %579 = vmatpush1.bf16.xpose.msra.mxu0 0
        %580 = vmatprep.subr.bf16.mxu0 0
        %581 = vmatpush1.bf16.xpose.msra.mxu0 0
        %582 = vmatprep.mubr.bf16.mxu0 0
        %583 = vmatmul.mubr.bf16.gmra.mrb[0].mxu0 %v545
        %v584 = vpop.f32.mrb[0].mxu0
        %v585 = vadd.f32 0.0, %v584
        %v586 = vpop.f32.mrb[0].mxu0
        %v587 = vpop.f32.mrb[0].mxu0
        %v588 = vadd.f32 0.0, %v587
        %v589 = vpop.f32.mrb[0].mxu0
        %590 = vdwg.mxu0
        %591 = vrot.lane.b32.xlu0 %v431, 104
        %v592 = vpop.permute.xlu0 %591
        %593 = vrot.lane.b32.xlu0 %v431, 72
        %v594 = vpop.permute.xlu0 %593
        %v596 = vsel %vm441, %v592, 0
        %v599 = vsel %vm441, %v594, 0
        %601 = vmatprep.subr.bf16.mxu0 0
        %602 = vmatpush1.bf16.xpose.msra.mxu0 %v599
        %603 = vmatprep.subr.bf16.mxu0 0
        %604 = vmatpush1.bf16.xpose.msra.mxu0 0
        %605 = vmatprep.subr.bf16.mxu0 0
        %606 = vmatpush1.bf16.xpose.msra.mxu0 0
        %607 = vmatprep.subr.bf16.mxu0 0
        %608 = vmatpush1.bf16.xpose.msra.mxu0 0
        %609 = vmatprep.subr.bf16.mxu0 0
        %610 = vmatpush1.bf16.xpose.msra.mxu0 0
        %611 = vmatprep.subr.bf16.mxu0 0
        %612 = vmatpush1.bf16.xpose.msra.mxu0 0
        %613 = vmatprep.subr.bf16.mxu0 0
        %614 = vmatpush1.bf16.xpose.msra.mxu0 0
        %615 = vmatprep.subr.bf16.mxu0 0
        %616 = vmatpush1.bf16.xpose.msra.mxu0 0
        %617 = vmatprep.subr.bf16.mxu0 0
        %618 = vmatpush1.bf16.xpose.msra.mxu0 0
        %619 = vmatprep.subr.bf16.mxu0 0
        %620 = vmatpush1.bf16.xpose.msra.mxu0 0
        %621 = vmatprep.subr.bf16.mxu0 0
        %622 = vmatpush1.bf16.xpose.msra.mxu0 0
        %623 = vmatprep.subr.bf16.mxu0 0
        %624 = vmatpush1.bf16.xpose.msra.mxu0 0
        %625 = vmatprep.subr.bf16.mxu0 0
        %626 = vmatpush1.bf16.xpose.msra.mxu0 0
        %627 = vmatprep.subr.bf16.mxu0 0
        %628 = vmatpush1.bf16.xpose.msra.mxu0 0
        %629 = vmatprep.subr.bf16.mxu0 0
        %630 = vmatpush1.bf16.xpose.msra.mxu0 0
        %631 = vmatprep.subr.bf16.mxu0 0
        %632 = vmatpush1.bf16.xpose.msra.mxu0 0
        %633 = vmatprep.mubr.bf16.mxu0 0
        %634 = vmatmul.mubr.bf16.gmra.mrb[0].mxu0 %v596
        %v635 = vpop.f32.mrb[0].mxu0
        %v636 = vadd.f32 0.0, %v635
        %v637 = vpop.f32.mrb[0].mxu0
        %v638 = vpop.f32.mrb[0].mxu0
        %v639 = vadd.f32 0.0, %v638
        %v640 = vpop.f32.mrb[0].mxu0
        %641 = vdwg.mxu0
        %643 = vrot.lane.b32.xlu0 %v432, 96
        %v644 = vpop.permute.xlu0 %643
        %v646 = vsel %vm441, %v432, 0
        %v649 = vsel %vm441, %v644, 0
        %651 = vmatprep.subr.bf16.mxu0 0
        %652 = vmatpush1.bf16.xpose.msra.mxu0 %v649
        %653 = vmatprep.subr.bf16.mxu0 0
        %654 = vmatpush1.bf16.xpose.msra.mxu0 0
        %655 = vmatprep.subr.bf16.mxu0 0
        %656 = vmatpush1.bf16.xpose.msra.mxu0 0
        %657 = vmatprep.subr.bf16.mxu0 0
        %658 = vmatpush1.bf16.xpose.msra.mxu0 0
        %659 = vmatprep.subr.bf16.mxu0 0
        %660 = vmatpush1.bf16.xpose.msra.mxu0 0
        %661 = vmatprep.subr.bf16.mxu0 0
        %662 = vmatpush1.bf16.xpose.msra.mxu0 0
        %663 = vmatprep.subr.bf16.mxu0 0
        %664 = vmatpush1.bf16.xpose.msra.mxu0 0
        %665 = vmatprep.subr.bf16.mxu0 0
        %666 = vmatpush1.bf16.xpose.msra.mxu0 0
        %667 = vmatprep.subr.bf16.mxu0 0
        %668 = vmatpush1.bf16.xpose.msra.mxu0 0
        %669 = vmatprep.subr.bf16.mxu0 0
        %670 = vmatpush1.bf16.xpose.msra.mxu0 0
        %671 = vmatprep.subr.bf16.mxu0 0
        %672 = vmatpush1.bf16.xpose.msra.mxu0 0
        %673 = vmatprep.subr.bf16.mxu0 0
        %674 = vmatpush1.bf16.xpose.msra.mxu0 0
        %675 = vmatprep.subr.bf16.mxu0 0
        %676 = vmatpush1.bf16.xpose.msra.mxu0 0
        %677 = vmatprep.subr.bf16.mxu0 0
        %678 = vmatpush1.bf16.xpose.msra.mxu0 0
        %679 = vmatprep.subr.bf16.mxu0 0
        %680 = vmatpush1.bf16.xpose.msra.mxu0 0
        %681 = vmatprep.subr.bf16.mxu0 0
        %682 = vmatpush1.bf16.xpose.msra.mxu0 0
        %683 = vmatprep.mubr.bf16.mxu0 0
        %684 = vmatmul.mubr.bf16.gmra.mrb[0].mxu0 %v646
        %v685 = vpop.f32.mrb[0].mxu0
        %v686 = vadd.f32 0.0, %v685
        %v687 = vpop.f32.mrb[0].mxu0
        %v688 = vpop.f32.mrb[0].mxu0
        %v689 = vadd.f32 0.0, %v688
        %v690 = vpop.f32.mrb[0].mxu0
        %691 = vdwg.mxu0
        %692 = vrot.lane.b32.xlu0 %v432, 120
        %v693 = vpop.permute.xlu0 %692
        %694 = vrot.lane.b32.xlu0 %v432, 88
        %v695 = vpop.permute.xlu0 %694
        %v697 = vsel %vm441, %v693, 0
        %v700 = vsel %vm441, %v695, 0
        %702 = vmatprep.subr.bf16.mxu0 0
        %703 = vmatpush1.bf16.xpose.msra.mxu0 %v700
        %704 = vmatprep.subr.bf16.mxu0 0
        %705 = vmatpush1.bf16.xpose.msra.mxu0 0
        %706 = vmatprep.subr.bf16.mxu0 0
        %707 = vmatpush1.bf16.xpose.msra.mxu0 0
        %708 = vmatprep.subr.bf16.mxu0 0
        %709 = vmatpush1.bf16.xpose.msra.mxu0 0
        %710 = vmatprep.subr.bf16.mxu0 0
        %711 = vmatpush1.bf16.xpose.msra.mxu0 0
        %712 = vmatprep.subr.bf16.mxu0 0
        %713 = vmatpush1.bf16.xpose.msra.mxu0 0
        %714 = vmatprep.subr.bf16.mxu0 0
        %715 = vmatpush1.bf16.xpose.msra.mxu0 0
        %716 = vmatprep.subr.bf16.mxu0 0
        %717 = vmatpush1.bf16.xpose.msra.mxu0 0
        %718 = vmatprep.subr.bf16.mxu0 0
        %719 = vmatpush1.bf16.xpose.msra.mxu0 0
        %720 = vmatprep.subr.bf16.mxu0 0
        %721 = vmatpush1.bf16.xpose.msra.mxu0 0
        %722 = vmatprep.subr.bf16.mxu0 0
        %723 = vmatpush1.bf16.xpose.msra.mxu0 0
        %724 = vmatprep.subr.bf16.mxu0 0
        %725 = vmatpush1.bf16.xpose.msra.mxu0 0
        %726 = vmatprep.subr.bf16.mxu0 0
        %727 = vmatpush1.bf16.xpose.msra.mxu0 0
        %728 = vmatprep.subr.bf16.mxu0 0
        %729 = vmatpush1.bf16.xpose.msra.mxu0 0
        %730 = vmatprep.subr.bf16.mxu0 0
        %731 = vmatpush1.bf16.xpose.msra.mxu0 0
        %732 = vmatprep.subr.bf16.mxu0 0
        %733 = vmatpush1.bf16.xpose.msra.mxu0 0
        %734 = vmatprep.mubr.bf16.mxu0 0
        %735 = vmatmul.mubr.bf16.gmra.mrb[0].mxu0 %v697
        %v736 = vpop.f32.mrb[0].mxu0
        %v737 = vadd.f32 0.0, %v736
        %v738 = vpop.f32.mrb[0].mxu0
        %v739 = vpop.f32.mrb[0].mxu0
        %v740 = vadd.f32 0.0, %v739
        %v741 = vpop.f32.mrb[0].mxu0
        %742 = vdwg.mxu0
        %743 = vrot.lane.b32.xlu0 %v432, 112
        %v744 = vpop.permute.xlu0 %743
        %745 = vrot.lane.b32.xlu0 %v432, 80
        %v746 = vpop.permute.xlu0 %745
        %v748 = vsel %vm441, %v744, 0
        %v751 = vsel %vm441, %v746, 0
        %753 = vmatprep.subr.bf16.mxu0 0
        %754 = vmatpush1.bf16.xpose.msra.mxu0 %v751
        %755 = vmatprep.subr.bf16.mxu0 0
        %756 = vmatpush1.bf16.xpose.msra.mxu0 0
        %757 = vmatprep.subr.bf16.mxu0 0
        %758 = vmatpush1.bf16.xpose.msra.mxu0 0
        %759 = vmatprep.subr.bf16.mxu0 0
        %760 = vmatpush1.bf16.xpose.msra.mxu0 0
        %761 = vmatprep.subr.bf16.mxu0 0
        %762 = vmatpush1.bf16.xpose.msra.mxu0 0
        %763 = vmatprep.subr.bf16.mxu0 0
        %764 = vmatpush1.bf16.xpose.msra.mxu0 0
        %765 = vmatprep.subr.bf16.mxu0 0
        %766 = vmatpush1.bf16.xpose.msra.mxu0 0
        %767 = vmatprep.subr.bf16.mxu0 0
        %768 = vmatpush1.bf16.xpose.msra.mxu0 0
        %769 = vmatprep.subr.bf16.mxu0 0
        %770 = vmatpush1.bf16.xpose.msra.mxu0 0
        %771 = vmatprep.subr.bf16.mxu0 0
        %772 = vmatpush1.bf16.xpose.msra.mxu0 0
        %773 = vmatprep.subr.bf16.mxu0 0
        %774 = vmatpush1.bf16.xpose.msra.mxu0 0
        %775 = vmatprep.subr.bf16.mxu0 0
        %776 = vmatpush1.bf16.xpose.msra.mxu0 0
        %777 = vmatprep.subr.bf16.mxu0 0
        %778 = vmatpush1.bf16.xpose.msra.mxu0 0
        %779 = vmatprep.subr.bf16.mxu0 0
        %780 = vmatpush1.bf16.xpose.msra.mxu0 0
        %781 = vmatprep.subr.bf16.mxu0 0
        %782 = vmatpush1.bf16.xpose.msra.mxu0 0
        %783 = vmatprep.subr.bf16.mxu0 0
        %784 = vmatpush1.bf16.xpose.msra.mxu0 0
        %785 = vmatprep.mubr.bf16.mxu0 0
        %786 = vmatmul.mubr.bf16.gmra.mrb[0].mxu0 %v748
        %v787 = vpop.f32.mrb[0].mxu0
        %v788 = vadd.f32 0.0, %v787
        %v789 = vpop.f32.mrb[0].mxu0
        %v790 = vpop.f32.mrb[0].mxu0
        %v791 = vadd.f32 0.0, %v790
        %v792 = vpop.f32.mrb[0].mxu0
        %793 = vdwg.mxu0
        %794 = vrot.lane.b32.xlu0 %v432, 104
        %v795 = vpop.permute.xlu0 %794
        %796 = vrot.lane.b32.xlu0 %v432, 72
        %v797 = vpop.permute.xlu0 %796
        %v799 = vsel %vm441, %v795, 0
        %v802 = vsel %vm441, %v797, 0
        %804 = vmatprep.subr.bf16.mxu0 0
        %805 = vmatpush1.bf16.xpose.msra.mxu0 %v802
        %806 = vmatprep.subr.bf16.mxu0 0
        %807 = vmatpush1.bf16.xpose.msra.mxu0 0
        %808 = vmatprep.subr.bf16.mxu0 0
        %809 = vmatpush1.bf16.xpose.msra.mxu0 0
        %810 = vmatprep.subr.bf16.mxu0 0
        %811 = vmatpush1.bf16.xpose.msra.mxu0 0
        %812 = vmatprep.subr.bf16.mxu0 0
        %813 = vmatpush1.bf16.xpose.msra.mxu0 0
        %814 = vmatprep.subr.bf16.mxu0 0
        %815 = vmatpush1.bf16.xpose.msra.mxu0 0
        %816 = vmatprep.subr.bf16.mxu0 0
        %817 = vmatpush1.bf16.xpose.msra.mxu0 0
        %818 = vmatprep.subr.bf16.mxu0 0
        %819 = vmatpush1.bf16.xpose.msra.mxu0 0
        %820 = vmatprep.subr.bf16.mxu0 0
        %821 = vmatpush1.bf16.xpose.msra.mxu0 0
        %822 = vmatprep.subr.bf16.mxu0 0
        %823 = vmatpush1.bf16.xpose.msra.mxu0 0
        %824 = vmatprep.subr.bf16.mxu0 0
        %825 = vmatpush1.bf16.xpose.msra.mxu0 0
        %826 = vmatprep.subr.bf16.mxu0 0
        %827 = vmatpush1.bf16.xpose.msra.mxu0 0
        %828 = vmatprep.subr.bf16.mxu0 0
        %829 = vmatpush1.bf16.xpose.msra.mxu0 0
        %830 = vmatprep.subr.bf16.mxu0 0
        %831 = vmatpush1.bf16.xpose.msra.mxu0 0
        %832 = vmatprep.subr.bf16.mxu0 0
        %833 = vmatpush1.bf16.xpose.msra.mxu0 0
        %834 = vmatprep.subr.bf16.mxu0 0
        %835 = vmatpush1.bf16.xpose.msra.mxu0 0
        %836 = vmatprep.mubr.bf16.mxu0 0
        %837 = vmatmul.mubr.bf16.gmra.mrb[0].mxu0 %v799
        %v838 = vpop.f32.mrb[0].mxu0
        %v839 = vadd.f32 0.0, %v838
        %v840 = vpop.f32.mrb[0].mxu0
        %v841 = vpop.f32.mrb[0].mxu0
        %v842 = vadd.f32 0.0, %v841
        %v843 = vpop.f32.mrb[0].mxu0
        %844 = vdwg.mxu0
        %vm845 = vcmp.ne.f32.partialorder %v433, 0.0
        %vm846 = vcmp.ne.f32.partialorder %v434, 0.0
        %vm847 = vcmp.ne.f32.partialorder %v436, 0.0
        %vm848 = vcmp.ne.f32.partialorder %v437, 0.0
        %v849 = vmul.f32 %v483, %v433
        %v850 = vmul.f32 %v486, %v434
        %v851 = vmul.f32 %v534, %v433
        %v852 = vmul.f32 %v537, %v434
        %v853 = vmul.f32 %v585, %v433
        %v854 = vmul.f32 %v588, %v434
        %v855 = vmul.f32 %v636, %v433
        %v856 = vmul.f32 %v639, %v434
        %v857 = vmul.f32 %v686, %v436
        %v858 = vmul.f32 %v689, %v437
        %v859 = vmul.f32 %v737, %v436
        %v860 = vmul.f32 %v740, %v437
        %v861 = vmul.f32 %v788, %v436
        %v862 = vmul.f32 %v791, %v437
        %v863 = vmul.f32 %v839, %v436
        %v864 = vmul.f32 %v842, %v437
        %v865 = vsel %vm845, %v849, -1e+30
        %v866 = vsel %vm846, %v850, -1e+30
        %v867 = vsel %vm845, %v851, -1e+30
        %v868 = vsel %vm846, %v852, -1e+30
        %v869 = vsel %vm845, %v853, -1e+30
        %v870 = vsel %vm846, %v854, -1e+30
        %v871 = vsel %vm845, %v855, -1e+30
        %v872 = vsel %vm846, %v856, -1e+30
        %v873 = vsel %vm847, %v857, -1e+30
        %v874 = vsel %vm848, %v858, -1e+30
        %v875 = vsel %vm847, %v859, -1e+30
        %v876 = vsel %vm848, %v860, -1e+30
        %v877 = vsel %vm847, %v861, -1e+30
        %v878 = vsel %vm848, %v862, -1e+30
        %v879 = vsel %vm847, %v863, -1e+30
        %v880 = vsel %vm848, %v864, -1e+30
        %vm881 = vcmask 130048
        %v882 = vsel %vm881, %v865, -inf
        %883 = vmax.xlane.f32.xlu0 %v882
        %v884 = vpop.xlane.xlu0 %883
        %v885 = vsel %vm881, %v866, -inf
        %886 = vmax.xlane.f32.xlu0 %v885
        %v887 = vpop.xlane.xlu0 %886
        %v888 = vsel %vm881, %v867, -inf
        %889 = vmax.xlane.f32.xlu0 %v888
        %v890 = vpop.xlane.xlu0 %889
        %v891 = vsel %vm881, %v868, -inf
        %892 = vmax.xlane.f32.xlu0 %v891
        %v893 = vpop.xlane.xlu0 %892
        %v894 = vsel %vm881, %v869, -inf
        %895 = vmax.xlane.f32.xlu0 %v894
        %v896 = vpop.xlane.xlu0 %895
        %v897 = vsel %vm881, %v870, -inf
        %898 = vmax.xlane.f32.xlu0 %v897
        %v899 = vpop.xlane.xlu0 %898
        %v900 = vsel %vm881, %v871, -inf
        %901 = vmax.xlane.f32.xlu0 %v900
        %v902 = vpop.xlane.xlu0 %901
        %v903 = vsel %vm881, %v872, -inf
        %904 = vmax.xlane.f32.xlu0 %v903
        %v905 = vpop.xlane.xlu0 %904
        %v906 = vsel %vm881, %v873, -inf
        %907 = vmax.xlane.f32.xlu0 %v906
        %v908 = vpop.xlane.xlu0 %907
        %v909 = vsel %vm881, %v874, -inf
        %910 = vmax.xlane.f32.xlu0 %v909
        %v911 = vpop.xlane.xlu0 %910
        %v912 = vsel %vm881, %v875, -inf
        %913 = vmax.xlane.f32.xlu0 %v912
        %v914 = vpop.xlane.xlu0 %913
        %v915 = vsel %vm881, %v876, -inf
        %916 = vmax.xlane.f32.xlu0 %v915
        %v917 = vpop.xlane.xlu0 %916
        %v918 = vsel %vm881, %v877, -inf
        %919 = vmax.xlane.f32.xlu0 %v918
        %v920 = vpop.xlane.xlu0 %919
        %v921 = vsel %vm881, %v878, -inf
        %922 = vmax.xlane.f32.xlu0 %v921
        %v923 = vpop.xlane.xlu0 %922
        %v924 = vsel %vm881, %v879, -inf
        %925 = vmax.xlane.f32.xlu0 %v924
        %v926 = vpop.xlane.xlu0 %925
        %v927 = vsel %vm881, %v880, -inf
        %928 = vmax.xlane.f32.xlu0 %v927
        %v929 = vpop.xlane.xlu0 %928
        %v930 = vsub.f32 %v865, %v884
        %v931 = vsub.f32 %v866, %v887
        %v932 = vsub.f32 %v867, %v890
        %v933 = vsub.f32 %v868, %v893
        %v934 = vsub.f32 %v869, %v896
        %v935 = vsub.f32 %v870, %v899
        %v936 = vsub.f32 %v871, %v902
        %v937 = vsub.f32 %v872, %v905
        %v938 = vsub.f32 %v873, %v908
        %v939 = vsub.f32 %v874, %v911
        %v940 = vsub.f32 %v875, %v914
        %v941 = vsub.f32 %v876, %v917
        %v942 = vsub.f32 %v877, %v920
        %v943 = vsub.f32 %v878, %v923
        %v944 = vsub.f32 %v879, %v926
        %v945 = vsub.f32 %v880, %v929
        %v946 = vmul.f32 %v930, 1.442695
        %v947 = vpow.pop %v946
        %v948 = vmul.f32 %v931, 1.442695
        %v949 = vpow.pop %v948
        %v950 = vmul.f32 %v932, 1.442695
        %v951 = vpow.pop %v950
        %v952 = vmul.f32 %v933, 1.442695
        %v953 = vpow.pop %v952
        %v954 = vmul.f32 %v934, 1.442695
        %v955 = vpow.pop %v954
        %v956 = vmul.f32 %v935, 1.442695
        %v957 = vpow.pop %v956
        %v958 = vmul.f32 %v936, 1.442695
        %v959 = vpow.pop %v958
        %v960 = vmul.f32 %v937, 1.442695
        %v961 = vpow.pop %v960
        %v962 = vmul.f32 %v938, 1.442695
        %v963 = vpow.pop %v962
        %v964 = vmul.f32 %v939, 1.442695
        %v965 = vpow.pop %v964
        %v966 = vmul.f32 %v940, 1.442695
        %v967 = vpow.pop %v966
        %v968 = vmul.f32 %v941, 1.442695
        %v969 = vpow.pop %v968
        %v970 = vmul.f32 %v942, 1.442695
        %v971 = vpow.pop %v970
        %v972 = vmul.f32 %v943, 1.442695
        %v973 = vpow.pop %v972
        %v974 = vmul.f32 %v944, 1.442695
        %v975 = vpow.pop %v974
        %v976 = vmul.f32 %v945, 1.442695
        %v977 = vpow.pop %v976
        %v978 = vsel %vm845, %v947, 0.0
        %v979 = vsel %vm846, %v949, 0.0
        %v980 = vsel %vm845, %v951, 0.0
        %v981 = vsel %vm846, %v953, 0.0
        %v982 = vsel %vm845, %v955, 0.0
        %v983 = vsel %vm846, %v957, 0.0
        %v984 = vsel %vm845, %v959, 0.0
        %v985 = vsel %vm846, %v961, 0.0
        %v986 = vsel %vm847, %v963, 0.0
        %v987 = vsel %vm848, %v965, 0.0
        %v988 = vsel %vm847, %v967, 0.0
        %v989 = vsel %vm848, %v969, 0.0
        %v990 = vsel %vm847, %v971, 0.0
        %v991 = vsel %vm848, %v973, 0.0
        %v992 = vsel %vm847, %v975, 0.0
        %v993 = vsel %vm848, %v977, 0.0
        %v994 = vsel %vm881, %v978, 0.0
        %995 = vadd.xlane.f32.xlu0 %v994
        %v996 = vpop.xlane.xlu0 %995
        %v997 = vsel %vm881, %v979, 0.0
        %998 = vadd.xlane.f32.xlu0 %v997
        %v999 = vpop.xlane.xlu0 %998
        %v1000 = vsel %vm881, %v980, 0.0
        %1001 = vadd.xlane.f32.xlu0 %v1000
        %v1002 = vpop.xlane.xlu0 %1001
        %v1003 = vsel %vm881, %v981, 0.0
        %1004 = vadd.xlane.f32.xlu0 %v1003
        %v1005 = vpop.xlane.xlu0 %1004
        %v1006 = vsel %vm881, %v982, 0.0
        %1007 = vadd.xlane.f32.xlu0 %v1006
        %v1008 = vpop.xlane.xlu0 %1007
        %v1009 = vsel %vm881, %v983, 0.0
        %1010 = vadd.xlane.f32.xlu0 %v1009
        %v1011 = vpop.xlane.xlu0 %1010
        %v1012 = vsel %vm881, %v984, 0.0
        %1013 = vadd.xlane.f32.xlu0 %v1012
        %v1014 = vpop.xlane.xlu0 %1013
        %v1015 = vsel %vm881, %v985, 0.0
        %1016 = vadd.xlane.f32.xlu0 %v1015
        %v1017 = vpop.xlane.xlu0 %1016
        %v1018 = vsel %vm881, %v986, 0.0
        %1019 = vadd.xlane.f32.xlu0 %v1018
        %v1020 = vpop.xlane.xlu0 %1019
        %v1021 = vsel %vm881, %v987, 0.0
        %1022 = vadd.xlane.f32.xlu0 %v1021
        %v1023 = vpop.xlane.xlu0 %1022
        %v1024 = vsel %vm881, %v988, 0.0
        %1025 = vadd.xlane.f32.xlu0 %v1024
        %v1026 = vpop.xlane.xlu0 %1025
        %v1027 = vsel %vm881, %v989, 0.0
        %1028 = vadd.xlane.f32.xlu0 %v1027
        %v1029 = vpop.xlane.xlu0 %1028
        %v1030 = vsel %vm881, %v990, 0.0
        %1031 = vadd.xlane.f32.xlu0 %v1030
        %v1032 = vpop.xlane.xlu0 %1031
        %v1033 = vsel %vm881, %v991, 0.0
        %1034 = vadd.xlane.f32.xlu0 %v1033
        %v1035 = vpop.xlane.xlu0 %1034
        %v1036 = vsel %vm881, %v992, 0.0
        %1037 = vadd.xlane.f32.xlu0 %v1036
        %v1038 = vpop.xlane.xlu0 %1037
        %v1039 = vsel %vm881, %v993, 0.0
        %1040 = vadd.xlane.f32.xlu0 %v1039
        %v1041 = vpop.xlane.xlu0 %1040
        %vm1042 = vcmp.eq.f32.partialorder %v996, 0.0
        %vm1043 = vcmp.eq.f32.partialorder %v999, 0.0
        %vm1044 = vcmp.eq.f32.partialorder %v1002, 0.0
        %vm1045 = vcmp.eq.f32.partialorder %v1005, 0.0
        %vm1046 = vcmp.eq.f32.partialorder %v1008, 0.0
        %vm1047 = vcmp.eq.f32.partialorder %v1011, 0.0
        %vm1048 = vcmp.eq.f32.partialorder %v1014, 0.0
        %vm1049 = vcmp.eq.f32.partialorder %v1017, 0.0
        %vm1050 = vcmp.eq.f32.partialorder %v1020, 0.0
        %vm1051 = vcmp.eq.f32.partialorder %v1023, 0.0
        %vm1052 = vcmp.eq.f32.partialorder %v1026, 0.0
        %vm1053 = vcmp.eq.f32.partialorder %v1029, 0.0
        %vm1054 = vcmp.eq.f32.partialorder %v1032, 0.0
        %vm1055 = vcmp.eq.f32.partialorder %v1035, 0.0
        %vm1056 = vcmp.eq.f32.partialorder %v1038, 0.0
        %vm1057 = vcmp.eq.f32.partialorder %v1041, 0.0
        %v1058 = vsel %vm1042, 1.0, %v996
        %v1059 = vsel %vm1043, 1.0, %v999
        %v1060 = vsel %vm1044, 1.0, %v1002
        %v1061 = vsel %vm1045, 1.0, %v1005
        %v1062 = vsel %vm1046, 1.0, %v1008
        %v1063 = vsel %vm1047, 1.0, %v1011
        %v1064 = vsel %vm1048, 1.0, %v1014
        %v1065 = vsel %vm1049, 1.0, %v1017
        %v1066 = vsel %vm1050, 1.0, %v1020
        %v1067 = vsel %vm1051, 1.0, %v1023
        %v1068 = vsel %vm1052, 1.0, %v1026
        %v1069 = vsel %vm1053, 1.0, %v1029
        %v1070 = vsel %vm1054, 1.0, %v1032
        %v1071 = vsel %vm1055, 1.0, %v1035
        %v1072 = vsel %vm1056, 1.0, %v1038
        %v1073 = vsel %vm1057, 1.0, %v1041
        %v1074 = vrcp.pop %v1058
        %v1075 = vrcp.pop %v1059
        %v1076 = vrcp.pop %v1060
        %v1077 = vrcp.pop %v1061
        %v1078 = vrcp.pop %v1062
        %v1079 = vrcp.pop %v1063
        %v1080 = vrcp.pop %v1064
        %v1081 = vrcp.pop %v1065
        %v1082 = vrcp.pop %v1066
        %v1083 = vrcp.pop %v1067
        %v1084 = vrcp.pop %v1068
        %v1085 = vrcp.pop %v1069
        %v1086 = vrcp.pop %v1070
        %v1087 = vrcp.pop %v1071
        %v1088 = vrcp.pop %v1072
        %v1089 = vrcp.pop %v1073
        %v1090 = vmul.f32 %v978, %v1074
        %v1091 = vmul.f32 %v979, %v1075
        %v1092 = vmul.f32 %v980, %v1076
        %v1093 = vmul.f32 %v981, %v1077
        %v1094 = vmul.f32 %v982, %v1078
        %v1095 = vmul.f32 %v983, %v1079
        %v1096 = vmul.f32 %v984, %v1080
        %v1097 = vmul.f32 %v985, %v1081
        %v1098 = vmul.f32 %v986, %v1082
        %v1099 = vmul.f32 %v987, %v1083
        %v1100 = vmul.f32 %v988, %v1084
        %v1101 = vmul.f32 %v989, %v1085
        %v1102 = vmul.f32 %v990, %v1086
        %v1103 = vmul.f32 %v991, %v1087
        %v1104 = vmul.f32 %v992, %v1088
        %v1105 = vmul.f32 %v993, %v1089
        %v1106 = vpack.c.bf16 %v1091, %v1090
        %v1107 = vpack.c.bf16 %v1093, %v1092
        %v1108 = vpack.c.bf16 %v1095, %v1094
        %v1109 = vpack.c.bf16 %v1097, %v1096
        %v1110 = vpack.c.bf16 %v1099, %v1098
        %v1111 = vpack.c.bf16 %v1101, %v1100
        %v1112 = vpack.c.bf16 %v1103, %v1102
        %v1113 = vpack.c.bf16 %v1105, %v1104
        %1114 = vrot.lane.b32.xlu0 %v431, 64
        %v1115 = vpop.permute.xlu0 %1114
        %v1118 = vsel %vm881, %v1106, 0
        %1120 = vmatprep.subr.bf16.mxu0 0
        %1121 = vmatpush1.bf16.msra.mxu0 %v1115
        %1122 = vmatprep.subr.bf16.mxu0 0
        %1123 = vmatpush1.bf16.msra.mxu0 0
        %1124 = vmatprep.subr.bf16.mxu0 0
        %1125 = vmatpush1.bf16.msra.mxu0 0
        %1126 = vmatprep.subr.bf16.mxu0 0
        %1127 = vmatpush1.bf16.msra.mxu0 0
        %1128 = vmatprep.subr.bf16.mxu0 0
        %1129 = vmatpush1.bf16.msra.mxu0 0
        %1130 = vmatprep.subr.bf16.mxu0 0
        %1131 = vmatpush1.bf16.msra.mxu0 0
        %1132 = vmatprep.subr.bf16.mxu0 0
        %1133 = vmatpush1.bf16.msra.mxu0 0
        %1134 = vmatprep.subr.bf16.mxu0 0
        %1135 = vmatpush1.bf16.msra.mxu0 0
        %1136 = vmatprep.subr.bf16.mxu0 0
        %1137 = vmatpush1.bf16.msra.mxu0 0
        %1138 = vmatprep.subr.bf16.mxu0 0
        %1139 = vmatpush1.bf16.msra.mxu0 0
        %1140 = vmatprep.subr.bf16.mxu0 0
        %1141 = vmatpush1.bf16.msra.mxu0 0
        %1142 = vmatprep.subr.bf16.mxu0 0
        %1143 = vmatpush1.bf16.msra.mxu0 0
        %1144 = vmatprep.subr.bf16.mxu0 0
        %1145 = vmatpush1.bf16.msra.mxu0 0
        %1146 = vmatprep.subr.bf16.mxu0 0
        %1147 = vmatpush1.bf16.msra.mxu0 0
        %1148 = vmatprep.subr.bf16.mxu0 0
        %1149 = vmatpush1.bf16.msra.mxu0 0
        %1150 = vmatprep.subr.bf16.mxu0 0
        %1151 = vmatpush1.bf16.msra.mxu0 0
        %1152 = vmatprep.mubr.bf16.mxu0 0
        %1153 = vmatmul.mubr.bf16.gmra.mrb[0].mxu0 %v1118
        %v1154 = vpop.f32.mrb[0].mxu0
        %v1155 = vadd.f32 0.0, %v1154
        %v1156 = vpop.f32.mrb[0].mxu0
        %v1157 = vpop.f32.mrb[0].mxu0
        %v1158 = vadd.f32 0.0, %v1157
        %v1159 = vpop.f32.mrb[0].mxu0
        %1160 = vdwg.mxu0
        %1161 = vrot.lane.b32.xlu0 %v431, 56
        %v1162 = vpop.permute.xlu0 %1161
        %v1165 = vsel %vm881, %v1107, 0
        %1167 = vmatprep.subr.bf16.mxu0 0
        %1168 = vmatpush1.bf16.msra.mxu0 %v1162
        %1169 = vmatprep.subr.bf16.mxu0 0
        %1170 = vmatpush1.bf16.msra.mxu0 0
        %1171 = vmatprep.subr.bf16.mxu0 0
        %1172 = vmatpush1.bf16.msra.mxu0 0
        %1173 = vmatprep.subr.bf16.mxu0 0
        %1174 = vmatpush1.bf16.msra.mxu0 0
        %1175 = vmatprep.subr.bf16.mxu0 0
        %1176 = vmatpush1.bf16.msra.mxu0 0
        %1177 = vmatprep.subr.bf16.mxu0 0
        %1178 = vmatpush1.bf16.msra.mxu0 0
        %1179 = vmatprep.subr.bf16.mxu0 0
        %1180 = vmatpush1.bf16.msra.mxu0 0
        %1181 = vmatprep.subr.bf16.mxu0 0
        %1182 = vmatpush1.bf16.msra.mxu0 0
        %1183 = vmatprep.subr.bf16.mxu0 0
        %1184 = vmatpush1.bf16.msra.mxu0 0
        %1185 = vmatprep.subr.bf16.mxu0 0
        %1186 = vmatpush1.bf16.msra.mxu0 0
        %1187 = vmatprep.subr.bf16.mxu0 0
        %1188 = vmatpush1.bf16.msra.mxu0 0
        %1189 = vmatprep.subr.bf16.mxu0 0
        %1190 = vmatpush1.bf16.msra.mxu0 0
        %1191 = vmatprep.subr.bf16.mxu0 0
        %1192 = vmatpush1.bf16.msra.mxu0 0
        %1193 = vmatprep.subr.bf16.mxu0 0
        %1194 = vmatpush1.bf16.msra.mxu0 0
        %1195 = vmatprep.subr.bf16.mxu0 0
        %1196 = vmatpush1.bf16.msra.mxu0 0
        %1197 = vmatprep.subr.bf16.mxu0 0
        %1198 = vmatpush1.bf16.msra.mxu0 0
        %1199 = vmatprep.mubr.bf16.mxu0 0
        %1200 = vmatmul.mubr.bf16.gmra.mrb[0].mxu0 %v1165
        %v1201 = vpop.f32.mrb[0].mxu0
        %v1202 = vadd.f32 0.0, %v1201
        %v1203 = vpop.f32.mrb[0].mxu0
        %v1204 = vpop.f32.mrb[0].mxu0
        %v1205 = vadd.f32 0.0, %v1204
        %v1206 = vpop.f32.mrb[0].mxu0
        %1207 = vdwg.mxu0
        %1208 = vrot.lane.b32.xlu0 %v431, 48
        %v1209 = vpop.permute.xlu0 %1208
        %v1212 = vsel %vm881, %v1108, 0
        %1214 = vmatprep.subr.bf16.mxu0 0
        %1215 = vmatpush1.bf16.msra.mxu0 %v1209
        %1216 = vmatprep.subr.bf16.mxu0 0
        %1217 = vmatpush1.bf16.msra.mxu0 0
        %1218 = vmatprep.subr.bf16.mxu0 0
        %1219 = vmatpush1.bf16.msra.mxu0 0
        %1220 = vmatprep.subr.bf16.mxu0 0
        %1221 = vmatpush1.bf16.msra.mxu0 0
        %1222 = vmatprep.subr.bf16.mxu0 0
        %1223 = vmatpush1.bf16.msra.mxu0 0
        %1224 = vmatprep.subr.bf16.mxu0 0
        %1225 = vmatpush1.bf16.msra.mxu0 0
        %1226 = vmatprep.subr.bf16.mxu0 0
        %1227 = vmatpush1.bf16.msra.mxu0 0
        %1228 = vmatprep.subr.bf16.mxu0 0
        %1229 = vmatpush1.bf16.msra.mxu0 0
        %1230 = vmatprep.subr.bf16.mxu0 0
        %1231 = vmatpush1.bf16.msra.mxu0 0
        %1232 = vmatprep.subr.bf16.mxu0 0
        %1233 = vmatpush1.bf16.msra.mxu0 0
        %1234 = vmatprep.subr.bf16.mxu0 0
        %1235 = vmatpush1.bf16.msra.mxu0 0
        %1236 = vmatprep.subr.bf16.mxu0 0
        %1237 = vmatpush1.bf16.msra.mxu0 0
        %1238 = vmatprep.subr.bf16.mxu0 0
        %1239 = vmatpush1.bf16.msra.mxu0 0
        %1240 = vmatprep.subr.bf16.mxu0 0
        %1241 = vmatpush1.bf16.msra.mxu0 0
        %1242 = vmatprep.subr.bf16.mxu0 0
        %1243 = vmatpush1.bf16.msra.mxu0 0
        %1244 = vmatprep.subr.bf16.mxu0 0
        %1245 = vmatpush1.bf16.msra.mxu0 0
        %1246 = vmatprep.mubr.bf16.mxu0 0
        %1247 = vmatmul.mubr.bf16.gmra.mrb[0].mxu0 %v1212
        %v1248 = vpop.f32.mrb[0].mxu0
        %v1249 = vadd.f32 0.0, %v1248
        %v1250 = vpop.f32.mrb[0].mxu0
        %v1251 = vpop.f32.mrb[0].mxu0
        %v1252 = vadd.f32 0.0, %v1251
        %v1253 = vpop.f32.mrb[0].mxu0
        %1254 = vdwg.mxu0
        %1255 = vrot.lane.b32.xlu0 %v431, 40
        %v1256 = vpop.permute.xlu0 %1255
        %v1259 = vsel %vm881, %v1109, 0
        %1261 = vmatprep.subr.bf16.mxu0 0
        %1262 = vmatpush1.bf16.msra.mxu0 %v1256
        %1263 = vmatprep.subr.bf16.mxu0 0
        %1264 = vmatpush1.bf16.msra.mxu0 0
        %1265 = vmatprep.subr.bf16.mxu0 0
        %1266 = vmatpush1.bf16.msra.mxu0 0
        %1267 = vmatprep.subr.bf16.mxu0 0
        %1268 = vmatpush1.bf16.msra.mxu0 0
        %1269 = vmatprep.subr.bf16.mxu0 0
        %1270 = vmatpush1.bf16.msra.mxu0 0
        %1271 = vmatprep.subr.bf16.mxu0 0
        %1272 = vmatpush1.bf16.msra.mxu0 0
        %1273 = vmatprep.subr.bf16.mxu0 0
        %1274 = vmatpush1.bf16.msra.mxu0 0
        %1275 = vmatprep.subr.bf16.mxu0 0
        %1276 = vmatpush1.bf16.msra.mxu0 0
        %1277 = vmatprep.subr.bf16.mxu0 0
        %1278 = vmatpush1.bf16.msra.mxu0 0
        %1279 = vmatprep.subr.bf16.mxu0 0
        %1280 = vmatpush1.bf16.msra.mxu0 0
        %1281 = vmatprep.subr.bf16.mxu0 0
        %1282 = vmatpush1.bf16.msra.mxu0 0
        %1283 = vmatprep.subr.bf16.mxu0 0
        %1284 = vmatpush1.bf16.msra.mxu0 0
        %1285 = vmatprep.subr.bf16.mxu0 0
        %1286 = vmatpush1.bf16.msra.mxu0 0
        %1287 = vmatprep.subr.bf16.mxu0 0
        %1288 = vmatpush1.bf16.msra.mxu0 0
        %1289 = vmatprep.subr.bf16.mxu0 0
        %1290 = vmatpush1.bf16.msra.mxu0 0
        %1291 = vmatprep.subr.bf16.mxu0 0
        %1292 = vmatpush1.bf16.msra.mxu0 0
        %1293 = vmatprep.mubr.bf16.mxu0 0
        %1294 = vmatmul.mubr.bf16.gmra.mrb[0].mxu0 %v1259
        %v1295 = vpop.f32.mrb[0].mxu0
        %v1296 = vadd.f32 0.0, %v1295
        %v1297 = vpop.f32.mrb[0].mxu0
        %v1298 = vpop.f32.mrb[0].mxu0
        %v1299 = vadd.f32 0.0, %v1298
        %v1300 = vpop.f32.mrb[0].mxu0
        %1301 = vdwg.mxu0
        %1304 = vrot.lane.b32.xlu0 %v1202, 8
        %v1305 = vpop.permute.xlu0 %1304
        %1306 = vrot.lane.b32.xlu0 %v1205, 8
        %v1307 = vpop.permute.xlu0 %1306
        %1312 = vrot.lane.b32.xlu0 %v1249, 16
        %v1313 = vpop.permute.xlu0 %1312
        %1314 = vrot.lane.b32.xlu0 %v1252, 16
        %v1315 = vpop.permute.xlu0 %1314
        %1320 = vrot.lane.b32.xlu0 %v1296, 24
        %v1321 = vpop.permute.xlu0 %1320
        %1322 = vrot.lane.b32.xlu0 %v1299, 24
        %v1323 = vpop.permute.xlu0 %1322
        %v1326 = vsel %vm441, %v1155, %v1305
        %v1327 = vsel %vm441, %v1158, %v1307
        %v1328 = vsel %vm881, %v1326, %v1313
        %v1329 = vsel %vm881, %v1327, %v1315
        %vm1330 = vcmask 195584
        %v1331 = vsel %vm1330, %v1328, %v1321
        %v1332 = vsel %vm1330, %v1329, %v1323
        %1333 = vrot.lane.b32.xlu0 %v432, 64
        %v1334 = vpop.permute.xlu0 %1333
        %v1337 = vsel %vm881, %v1110, 0
        %1339 = vmatprep.subr.bf16.mxu0 0
        %1340 = vmatpush1.bf16.msra.mxu0 %v1334
        %1341 = vmatprep.subr.bf16.mxu0 0
        %1342 = vmatpush1.bf16.msra.mxu0 0
        %1343 = vmatprep.subr.bf16.mxu0 0
        %1344 = vmatpush1.bf16.msra.mxu0 0
        %1345 = vmatprep.subr.bf16.mxu0 0
        %1346 = vmatpush1.bf16.msra.mxu0 0
        %1347 = vmatprep.subr.bf16.mxu0 0
        %1348 = vmatpush1.bf16.msra.mxu0 0
        %1349 = vmatprep.subr.bf16.mxu0 0
        %1350 = vmatpush1.bf16.msra.mxu0 0
        %1351 = vmatprep.subr.bf16.mxu0 0
        %1352 = vmatpush1.bf16.msra.mxu0 0
        %1353 = vmatprep.subr.bf16.mxu0 0
        %1354 = vmatpush1.bf16.msra.mxu0 0
        %1355 = vmatprep.subr.bf16.mxu0 0
        %1356 = vmatpush1.bf16.msra.mxu0 0
        %1357 = vmatprep.subr.bf16.mxu0 0
        %1358 = vmatpush1.bf16.msra.mxu0 0
        %1359 = vmatprep.subr.bf16.mxu0 0
        %1360 = vmatpush1.bf16.msra.mxu0 0
        %1361 = vmatprep.subr.bf16.mxu0 0
        %1362 = vmatpush1.bf16.msra.mxu0 0
        %1363 = vmatprep.subr.bf16.mxu0 0
        %1364 = vmatpush1.bf16.msra.mxu0 0
        %1365 = vmatprep.subr.bf16.mxu0 0
        %1366 = vmatpush1.bf16.msra.mxu0 0
        %1367 = vmatprep.subr.bf16.mxu0 0
        %1368 = vmatpush1.bf16.msra.mxu0 0
        %1369 = vmatprep.subr.bf16.mxu0 0
        %1370 = vmatpush1.bf16.msra.mxu0 0
        %1371 = vmatprep.mubr.bf16.mxu0 0
        %1372 = vmatmul.mubr.bf16.gmra.mrb[0].mxu0 %v1337
        %v1373 = vpop.f32.mrb[0].mxu0
        %v1374 = vadd.f32 0.0, %v1373
        %v1375 = vpop.f32.mrb[0].mxu0
        %v1376 = vpop.f32.mrb[0].mxu0
        %v1377 = vadd.f32 0.0, %v1376
        %v1378 = vpop.f32.mrb[0].mxu0
        %1379 = vdwg.mxu0
        %1380 = vrot.lane.b32.xlu0 %v432, 56
        %v1381 = vpop.permute.xlu0 %1380
        %v1384 = vsel %vm881, %v1111, 0
        %1386 = vmatprep.subr.bf16.mxu0 0
        %1387 = vmatpush1.bf16.msra.mxu0 %v1381
        %1388 = vmatprep.subr.bf16.mxu0 0
        %1389 = vmatpush1.bf16.msra.mxu0 0
        %1390 = vmatprep.subr.bf16.mxu0 0
        %1391 = vmatpush1.bf16.msra.mxu0 0
        %1392 = vmatprep.subr.bf16.mxu0 0
        %1393 = vmatpush1.bf16.msra.mxu0 0
        %1394 = vmatprep.subr.bf16.mxu0 0
        %1395 = vmatpush1.bf16.msra.mxu0 0
        %1396 = vmatprep.subr.bf16.mxu0 0
        %1397 = vmatpush1.bf16.msra.mxu0 0
        %1398 = vmatprep.subr.bf16.mxu0 0
        %1399 = vmatpush1.bf16.msra.mxu0 0
        %1400 = vmatprep.subr.bf16.mxu0 0
        %1401 = vmatpush1.bf16.msra.mxu0 0
        %1402 = vmatprep.subr.bf16.mxu0 0
        %1403 = vmatpush1.bf16.msra.mxu0 0
        %1404 = vmatprep.subr.bf16.mxu0 0
        %1405 = vmatpush1.bf16.msra.mxu0 0
        %1406 = vmatprep.subr.bf16.mxu0 0
        %1407 = vmatpush1.bf16.msra.mxu0 0
        %1408 = vmatprep.subr.bf16.mxu0 0
        %1409 = vmatpush1.bf16.msra.mxu0 0
        %1410 = vmatprep.subr.bf16.mxu0 0
        %1411 = vmatpush1.bf16.msra.mxu0 0
        %1412 = vmatprep.subr.bf16.mxu0 0
        %1413 = vmatpush1.bf16.msra.mxu0 0
        %1414 = vmatprep.subr.bf16.mxu0 0
        %1415 = vmatpush1.bf16.msra.mxu0 0
        %1416 = vmatprep.subr.bf16.mxu0 0
        %1417 = vmatpush1.bf16.msra.mxu0 0
        %1418 = vmatprep.mubr.bf16.mxu0 0
        %1419 = vmatmul.mubr.bf16.gmra.mrb[0].mxu0 %v1384
        %v1420 = vpop.f32.mrb[0].mxu0
        %v1421 = vadd.f32 0.0, %v1420
        %v1422 = vpop.f32.mrb[0].mxu0
        %v1423 = vpop.f32.mrb[0].mxu0
        %v1424 = vadd.f32 0.0, %v1423
        %v1425 = vpop.f32.mrb[0].mxu0
        %1426 = vdwg.mxu0
        %1427 = vrot.lane.b32.xlu0 %v432, 48
        %v1428 = vpop.permute.xlu0 %1427
        %v1431 = vsel %vm881, %v1112, 0
        %1433 = vmatprep.subr.bf16.mxu0 0
        %1434 = vmatpush1.bf16.msra.mxu0 %v1428
        %1435 = vmatprep.subr.bf16.mxu0 0
        %1436 = vmatpush1.bf16.msra.mxu0 0
        %1437 = vmatprep.subr.bf16.mxu0 0
        %1438 = vmatpush1.bf16.msra.mxu0 0
        %1439 = vmatprep.subr.bf16.mxu0 0
        %1440 = vmatpush1.bf16.msra.mxu0 0
        %1441 = vmatprep.subr.bf16.mxu0 0
        %1442 = vmatpush1.bf16.msra.mxu0 0
        %1443 = vmatprep.subr.bf16.mxu0 0
        %1444 = vmatpush1.bf16.msra.mxu0 0
        %1445 = vmatprep.subr.bf16.mxu0 0
        %1446 = vmatpush1.bf16.msra.mxu0 0
        %1447 = vmatprep.subr.bf16.mxu0 0
        %1448 = vmatpush1.bf16.msra.mxu0 0
        %1449 = vmatprep.subr.bf16.mxu0 0
        %1450 = vmatpush1.bf16.msra.mxu0 0
        %1451 = vmatprep.subr.bf16.mxu0 0
        %1452 = vmatpush1.bf16.msra.mxu0 0
        %1453 = vmatprep.subr.bf16.mxu0 0
        %1454 = vmatpush1.bf16.msra.mxu0 0
        %1455 = vmatprep.subr.bf16.mxu0 0
        %1456 = vmatpush1.bf16.msra.mxu0 0
        %1457 = vmatprep.subr.bf16.mxu0 0
        %1458 = vmatpush1.bf16.msra.mxu0 0
        %1459 = vmatprep.subr.bf16.mxu0 0
        %1460 = vmatpush1.bf16.msra.mxu0 0
        %1461 = vmatprep.subr.bf16.mxu0 0
        %1462 = vmatpush1.bf16.msra.mxu0 0
        %1463 = vmatprep.subr.bf16.mxu0 0
        %1464 = vmatpush1.bf16.msra.mxu0 0
        %1465 = vmatprep.mubr.bf16.mxu0 0
        %1466 = vmatmul.mubr.bf16.gmra.mrb[0].mxu0 %v1431
        %v1467 = vpop.f32.mrb[0].mxu0
        %v1468 = vadd.f32 0.0, %v1467
        %v1469 = vpop.f32.mrb[0].mxu0
        %v1470 = vpop.f32.mrb[0].mxu0
        %v1471 = vadd.f32 0.0, %v1470
        %v1472 = vpop.f32.mrb[0].mxu0
        %1473 = vdwg.mxu0
        %1474 = vrot.lane.b32.xlu0 %v432, 40
        %v1475 = vpop.permute.xlu0 %1474
        %v1478 = vsel %vm881, %v1113, 0
        %1480 = vmatprep.subr.bf16.mxu0 0
        %1481 = vmatpush1.bf16.msra.mxu0 %v1475
        %1482 = vmatprep.subr.bf16.mxu0 0
        %1483 = vmatpush1.bf16.msra.mxu0 0
        %1484 = vmatprep.subr.bf16.mxu0 0
        %1485 = vmatpush1.bf16.msra.mxu0 0
        %1486 = vmatprep.subr.bf16.mxu0 0
        %1487 = vmatpush1.bf16.msra.mxu0 0
        %1488 = vmatprep.subr.bf16.mxu0 0
        %1489 = vmatpush1.bf16.msra.mxu0 0
        %1490 = vmatprep.subr.bf16.mxu0 0
        %1491 = vmatpush1.bf16.msra.mxu0 0
        %1492 = vmatprep.subr.bf16.mxu0 0
        %1493 = vmatpush1.bf16.msra.mxu0 0
        %1494 = vmatprep.subr.bf16.mxu0 0
        %1495 = vmatpush1.bf16.msra.mxu0 0
        %1496 = vmatprep.subr.bf16.mxu0 0
        %1497 = vmatpush1.bf16.msra.mxu0 0
        %1498 = vmatprep.subr.bf16.mxu0 0
        %1499 = vmatpush1.bf16.msra.mxu0 0
        %1500 = vmatprep.subr.bf16.mxu0 0
        %1501 = vmatpush1.bf16.msra.mxu0 0
        %1502 = vmatprep.subr.bf16.mxu0 0
        %1503 = vmatpush1.bf16.msra.mxu0 0
        %1504 = vmatprep.subr.bf16.mxu0 0
        %1505 = vmatpush1.bf16.msra.mxu0 0
        %1506 = vmatprep.subr.bf16.mxu0 0
        %1507 = vmatpush1.bf16.msra.mxu0 0
        %1508 = vmatprep.subr.bf16.mxu0 0
        %1509 = vmatpush1.bf16.msra.mxu0 0
        %1510 = vmatprep.subr.bf16.mxu0 0
        %1511 = vmatpush1.bf16.msra.mxu0 0
        %1512 = vmatprep.mubr.bf16.mxu0 0
        %1513 = vmatmul.mubr.bf16.gmra.mrb[0].mxu0 %v1478
        %v1514 = vpop.f32.mrb[0].mxu0
        %v1515 = vadd.f32 0.0, %v1514
        %v1516 = vpop.f32.mrb[0].mxu0
        %v1517 = vpop.f32.mrb[0].mxu0
        %v1518 = vadd.f32 0.0, %v1517
        %v1519 = vpop.f32.mrb[0].mxu0
        %1520 = vdwg.mxu0
        %1523 = vrot.lane.b32.xlu0 %v1421, 8
        %v1524 = vpop.permute.xlu0 %1523
        %1525 = vrot.lane.b32.xlu0 %v1424, 8
        %v1526 = vpop.permute.xlu0 %1525
        %1531 = vrot.lane.b32.xlu0 %v1468, 16
        %v1532 = vpop.permute.xlu0 %1531
        %1533 = vrot.lane.b32.xlu0 %v1471, 16
        %v1534 = vpop.permute.xlu0 %1533
        %1539 = vrot.lane.b32.xlu0 %v1515, 24
        %v1540 = vpop.permute.xlu0 %1539
        %1541 = vrot.lane.b32.xlu0 %v1518, 24
        %v1542 = vpop.permute.xlu0 %1541
        %v1545 = vsel %vm441, %v1374, %v1524
        %v1546 = vsel %vm441, %v1377, %v1526
        %v1547 = vsel %vm881, %v1545, %v1532
        %v1548 = vsel %vm881, %v1546, %v1534
        %v1549 = vsel %vm1330, %v1547, %v1540
        %v1550 = vsel %vm1330, %v1548, %v1542
        %v1551 = vpack.c.bf16 %v1332, %v1331
        %v1552 = vpack.c.bf16 %v1550, %v1549
        %v1553 = vld [vmem:[#allocation8] sm:$0xf]
        %v1554 = vld [vmem:[#allocation8 + $0x4] sm:$0xf]
        %v1555 = vld [vmem:[#allocation8 + $0x8] sm:$0xf]
        %v1556 = vld [vmem:[#allocation8 + $0xc] sm:$0xf]
        %v1557 = vld [vmem:[%s5] sm:$0x1]
        %v1559 = vlaneseq
        %v1560 = vshrl.u32 %v1559, 7
        %v1561 = vsub.s32 0, %v1560
        %v1562 = vrot.slane %v1557, %v1561
        %v1568 = vunpack.c.l.b16 %v1553
        %v1569 = vunpack.c.l.b16 %v1554
        %v1570 = vunpack.c.l.b16 %v1555
        %v1571 = vunpack.c.l.b16 %v1556
        %v1572 = vpack.c.b16 %v1569, %v1568
        %v1573 = vpack.c.b16 %v1571, %v1570
        %v1577 = vsel %vm375, %v1551, 0
        %v1580 = vsel %vm375, %v1552, 0
        %1582 = vmatprep.subr.bf16.mxu0 0
        %1583 = vmatpush1.bf16.msra.mxu0 %v1572
        %1584 = vmatprep.subr.bf16.mxu0 0
        %1585 = vmatpush1.bf16.msra.mxu0 %v1573
        %1586 = vmatprep.subr.bf16.mxu0 0
        %1587 = vmatpush1.bf16.msra.mxu0 0
        %1588 = vmatprep.subr.bf16.mxu0 0
        %1589 = vmatpush1.bf16.msra.mxu0 0
        %1590 = vmatprep.subr.bf16.mxu0 0
        %1591 = vmatpush1.bf16.msra.mxu0 0
        %1592 = vmatprep.subr.bf16.mxu0 0
        %1593 = vmatpush1.bf16.msra.mxu0 0
        %1594 = vmatprep.subr.bf16.mxu0 0
        %1595 = vmatpush1.bf16.msra.mxu0 0
        %1596 = vmatprep.subr.bf16.mxu0 0
        %1597 = vmatpush1.bf16.msra.mxu0 0
        %1598 = vmatprep.subr.bf16.mxu0 0
        %1599 = vmatpush1.bf16.msra.mxu0 0
        %1600 = vmatprep.subr.bf16.mxu0 0
        %1601 = vmatpush1.bf16.msra.mxu0 0
        %1602 = vmatprep.subr.bf16.mxu0 0
        %1603 = vmatpush1.bf16.msra.mxu0 0
        %1604 = vmatprep.subr.bf16.mxu0 0
        %1605 = vmatpush1.bf16.msra.mxu0 0
        %1606 = vmatprep.subr.bf16.mxu0 0
        %1607 = vmatpush1.bf16.msra.mxu0 0
        %1608 = vmatprep.subr.bf16.mxu0 0
        %1609 = vmatpush1.bf16.msra.mxu0 0
        %1610 = vmatprep.subr.bf16.mxu0 0
        %1611 = vmatpush1.bf16.msra.mxu0 0
        %1612 = vmatprep.subr.bf16.mxu0 0
        %1613 = vmatpush1.bf16.msra.mxu0 0
        %1614 = vmatprep.mubr.bf16.mxu0 0
        %1615 = vmatmul.mubr.bf16.gmra.mrb[0].mxu0 %v1577
        %v1616 = vpop.f32.mrb[0].mxu0
        %v1617 = vadd.f32 %v1562, %v1616
        %v1618 = vpop.f32.mrb[0].mxu0
        %v1619 = vpop.f32.mrb[0].mxu0
        %v1620 = vadd.f32 %v1562, %v1619
        %v1621 = vpop.f32.mrb[0].mxu0
        %1622 = vmatprep.mubr.bf16.mxu0 0
        %1623 = vmatmul.mubr.bf16.gmra.mrb[0].mxu0 %v1580
        %v1624 = vpop.f32.mrb[0].mxu0
        %v1625 = vadd.f32 %v1562, %v1624
        %v1626 = vpop.f32.mrb[0].mxu0
        %v1627 = vpop.f32.mrb[0].mxu0
        %v1628 = vadd.f32 %v1562, %v1627
        %v1629 = vpop.f32.mrb[0].mxu0
        %1630 = vdwg.mxu0
        %1631 = vst.msk [vmem:[%s340] sm:$0xff] %vm375, %v1617
        %1632 = vst.msk [vmem:[%s340 + $0x8] sm:$0xff] %vm375, %v1620
        %s1633 = scalar_lea.vmem %s340, 16 [#allocation10]
        %1634 = vst.msk [vmem:[%s1633] sm:$0xff] %vm375, %v1625
        %1635 = vst.msk [vmem:[%s1633 + $0x8] sm:$0xff] %vm375, %v1628
        %s1636 = sand.u32 %s171, 1
        %s1637 = scalar_lea.sflag [#allocation4], %s1636
        %s1638 = sand.u32 %s171, 1
        %s1639 = smul.addr %s1638, 32
        %s1640 = scalar_lea.vmem [#allocation10], %s1639
        // Predicated region
        $region61: #{sparse_attention.1} parent=43 // pred_check
          %p1641 = pneg %p181
        $region62: #{sparse_attention.1} parent=43 // pred_check_branch
          %1643 = sbr.rel (%p1641) target = $region64
        $region63: #{sparse_attention.1} parent=43 // pred_region
          %s1644 = smul.u32 2, %s27
          %s1646 = ssub.s32 512, 512
          %1647 = vsyncadd %s1637, %s1646
          %s1648 = smul.addr %s1644, 2
          %s1649 = smul.addr %s1648, 128
          %s1650 = scalar_lea.hbm %s6, %s1649
          %s1651 = sshll.u32 %s1640, 4
          %s1652 = int_to_ptr.vmem [resolvable:$true] %s1651
          %1657 = dma.vmem_to_hbm [thread:$0]  %s1652, 512, %s1650, %s1637, 128, 128, 8
        $region64: #{sparse_attention.1} parent=43 // pred_fallthru
          _
      $region44: #{sparse_attention.1} parent=5 // pred_fallthru
        _
      %p1658 = scmp.le.s32.totalorder 2, %s22
      // Predicated region
      $region65: #{sparse_attention.1} parent=5 // pred_check
        %p1659 = pneg %p1658
      $region66: #{sparse_attention.1} parent=5 // pred_check_branch
        %1661 = sbr.rel (%p1659) target = $region68
      $region67: #{sparse_attention.1} parent=5 // pred_region
        %s1662 = ssub.s32 %s22, 2
        // Predicated region
        $region69: #{sparse_attention.1} parent=67 // pred_check
          %p1663 = pneg %p187
        $region70: #{sparse_attention.1} parent=67 // pred_check_branch
          %1665 = sbr.rel (%p1663) target = $region72
        $region71: #{sparse_attention.1} parent=67 // pred_region
          %s1666 = sand.u32 %s172, 1
          %s1667 = scalar_lea.sflag [#allocation4], %s1666
          %s1668 = sand.u32 %s172, 1
          %s1669 = smul.addr %s1668, 32
          %s1670 = scalar_lea.vmem [#allocation10], %s1669
          %1671 = dma.done %s1667, 512
        $region72: #{sparse_attention.1} parent=67 // pred_fallthru
          _
      $region68: #{sparse_attention.1} parent=5 // pred_fallthru
        _
    $region6: #{sparse_attention.1} parent=1 // loop_footer
      %s26 = sadd.s32 1, %s22
    $region7: #{sparse_attention.1} parent=1 // loop_footer_branch
      %21 = sbr.rel target = $region3
    $region8: #{sparse_attention.1} parent=1 // loop_exit
      _
    %1672 = vsyncpa [#allocation3], 1
    %s1673 = scalar_lea.sflag [#allocation3], 1
    %1674 = vsyncpa %s1673, 1
    %1675 = vsyncpa [#allocation6], 1
    %s1676 = scalar_lea.sflag [#allocation6], 1
    %1677 = vsyncpa %s1676, 1
    %1678 = vsyncpa [#allocation9], 1
    %1679 = vsyncpa [#allocation4], 1
    %s1680 = scalar_lea.sflag [#allocation4], 1
    %1681 = vsyncpa %s1680, 1

</llo_original>
